<compile_context>
chip_gen: v7x
topology: tpu7x:2x2x1
jax: 0.10.0
libtpu: 0.0.40
codegen_flags: <defaults>
</compile_context>

<pallas_src>
import functools

import jax
import jax.numpy as jnp
import numpy as np
from jax import lax
from jax.experimental import pallas as pl
from jax.experimental.pallas import tpu as pltpu


# ----------------------------- model dims -----------------------------------
X_DIM = 2
Y_DIM = 1
R_DIM = 8
Z_DIM = 8
H_DIM = 32

BATCH = 2
NUM_CONTEXT = 8
NUM_TARGET = 16

DATA_LANES = max(X_DIM + Y_DIM, X_DIM, 2 * Z_DIM)    # 16
OUT_LANES = max(2 * Z_DIM, 2 * Y_DIM)                # 16
W_LANES = max(H_DIM, R_DIM, 2 * Z_DIM, OUT_LANES)    # 32


def _pad8(n):
    return ((int(n) + 7) // 8) * 8


# ----------------------------- helpers ---------------------------------------
def _softplus(x):
    # matches torch.nn.functional.softplus (beta=1, threshold=20); used by both
    # the kernel and the pure-JAX reference so the two definitions are identical.
    safe = jnp.where(x > 20.0, 0.0, x)
    return jnp.where(x > 20.0, x, jnp.log1p(jnp.exp(safe)))


def _linear_init(key, fan_in, fan_out):
    # PyTorch nn.Linear default: U(-1/sqrt(fan_in), 1/sqrt(fan_in)) for W and b
    kw, kb = jax.random.split(key)
    bound = 1.0 / np.sqrt(fan_in)
    w = jax.random.uniform(kw, (fan_in, fan_out), jnp.float32, -bound, bound)
    b = jax.random.uniform(kb, (1, fan_out), jnp.float32, -bound, bound)
    return w, b


def init_params(key):
    keys = jax.random.split(key, 11)
    p = {}
    # Encoder xy_to_r: Linear(x+y, h) -> relu -> Linear(h, h) -> relu -> Linear(h, r)
    p["enc_w1"], p["enc_b1"] = _linear_init(keys[0], X_DIM + Y_DIM, H_DIM)
    p["enc_w2"], p["enc_b2"] = _linear_init(keys[1], H_DIM, H_DIM)
    p["enc_w3"], p["enc_b3"] = _linear_init(keys[2], H_DIM, R_DIM)
    # MuSigmaEncoder: Linear(r, r) -> relu -> {Linear(r, z), Linear(r, z)}
    p["ms_wr"], p["ms_br"] = _linear_init(keys[3], R_DIM, R_DIM)
    p["ms_wmu"], p["ms_bmu"] = _linear_init(keys[4], R_DIM, Z_DIM)
    p["ms_wsig"], p["ms_bsig"] = _linear_init(keys[5], R_DIM, Z_DIM)
    # Decoder: Linear(x+z, h) -> relu -> Linear(h,h) -> relu -> Linear(h,h) -> relu
    p["dec_w1"], p["dec_b1"] = _linear_init(keys[6], X_DIM + Z_DIM, H_DIM)
    p["dec_w2"], p["dec_b2"] = _linear_init(keys[7], H_DIM, H_DIM)
    p["dec_w3"], p["dec_b3"] = _linear_init(keys[8], H_DIM, H_DIM)
    p["dec_wmu"], p["dec_bmu"] = _linear_init(keys[9], H_DIM, Y_DIM)
    p["dec_wsig"], p["dec_bsig"] = _linear_init(keys[10], H_DIM, Y_DIM)
    return p


# ----------------------------- weight slab layout -----------------------------
# Every entry is placed at an 8-row-aligned offset of one (rows, W_LANES) slab.
_W_ENTRIES = (
    ("enc_w1", X_DIM + Y_DIM, H_DIM),
    ("enc_b1", 1, H_DIM),
    ("enc_w2", H_DIM, H_DIM),
    ("enc_b2", 1, H_DIM),
    ("enc_w3", H_DIM, R_DIM),
    ("enc_b3", 1, R_DIM),
    ("ms_wr", R_DIM, R_DIM),
    ("ms_br", 1, R_DIM),
    ("ms_w", R_DIM, 2 * Z_DIM),          # mu | sigma heads, lane-packed
    ("ms_b", 1, 2 * Z_DIM),
    ("dec_w1x", X_DIM, H_DIM),
    ("dec_w1z2", 2 * Z_DIM, H_DIM),      # [[W1z],[W1z]] stacked
    ("dec_b1", 1, H_DIM),
    ("dec_w2", H_DIM, H_DIM),
    ("dec_b2", 1, H_DIM),
    ("dec_w3", H_DIM, H_DIM),
    ("dec_b3", 1, H_DIM),
    ("dec_wo", H_DIM, OUT_LANES),        # mu|sigma in lanes [0:2*Y_DIM], zero-padded after
    ("dec_bo", 1, OUT_LANES),
)


def _weight_layout():
    layout, off = {}, 0
    for name, fi, fo in _W_ENTRIES:
        layout[name] = (off, fi, fo)
        off += _pad8(fi)
    return layout, off


_W_LAYOUT, _W_ROWS = _weight_layout()


def _pack_weight_slab(p):
    """All weights/biases in one (rows, 32) f32 slab -> a single input DMA."""
    vals = {
        "enc_w1": p["enc_w1"], "enc_b1": p["enc_b1"],
        "enc_w2": p["enc_w2"], "enc_b2": p["enc_b2"],
        "enc_w3": p["enc_w3"], "enc_b3": p["enc_b3"],
        "ms_wr": p["ms_wr"], "ms_br": p["ms_br"],
        "ms_w": jnp.concatenate([p["ms_wmu"], p["ms_wsig"]], axis=1),
        "ms_b": jnp.concatenate([p["ms_bmu"], p["ms_bsig"]], axis=1),
        "dec_w1x": p["dec_w1"][:X_DIM],
        "dec_w1z2": jnp.concatenate([p["dec_w1"][X_DIM:], p["dec_w1"][X_DIM:]], axis=0),
        "dec_b1": p["dec_b1"],
        "dec_w2": p["dec_w2"], "dec_b2": p["dec_b2"],
        "dec_w3": p["dec_w3"], "dec_b3": p["dec_b3"],
        "dec_wo": jnp.concatenate([p["dec_wmu"], p["dec_wsig"]], axis=1),
        "dec_bo": jnp.concatenate([p["dec_bmu"], p["dec_bsig"]], axis=1),
    }
    slab = jnp.zeros((_W_ROWS, W_LANES), jnp.float32)
    for name, v in vals.items():
        off, _, _ = _W_LAYOUT[name]
        slab = slab.at[off:off + v.shape[0], 0:v.shape[1]].set(v.astype(jnp.float32))
    return slab


# ----------------------------- fused kernel ----------------------------------
def np_fused_kernel(data_ref, w_ref, out_ref, *, cfg):
    f32 = jnp.float32
    i32 = jnp.int32

    def W(name):
        off, fi, fo = _W_LAYOUT[name]           # static, 8-aligned row offsets
        return w_ref[off:off + fi, 0:fo]

    x_dim, y_dim, z_dim = cfg["x_dim"], cfg["y_dim"], cfg["z_dim"]
    p_pad, nd_pad, g_pad = cfg["p_pad"], cfg["nd_pad"], cfg["g_pad"]

    # ---- unpack the data slab (static, 8-row-aligned views)
    xy = data_ref[0:p_pad, 0:x_dim + y_dim]                                   # (P_pad, x+y)
    xt = data_ref[p_pad:p_pad + nd_pad, 0:x_dim]                              # (Nd_pad, x)
    one_eps = data_ref[p_pad + nd_pad:p_pad + nd_pad + g_pad, 0:2 * z_dim]    # (G_pad, 2z) = [1|eps]

    # ---- Encoder MLP over every (x_i, y_i) pair (rows = all points of all groups)
    h = jnp.maximum(jnp.dot(xy, W("enc_w1"), preferred_element_type=f32) + W("enc_b1"), 0.0)
    h = jnp.maximum(jnp.dot(h, W("enc_w2"), preferred_element_type=f32) + W("enc_b2"), 0.0)
    r_i = jnp.dot(h, W("enc_w3"), preferred_element_type=f32) + W("enc_b3")   # (P_pad, r)

    # ---- per-group mean as a constant matmul; membership mask built in-kernel
    #      from iotas (VPU filler under MXU/DMA slack) -> no extra input DMA.
    g_idx = lax.broadcasted_iota(i32, (g_pad, p_pad), 0)
    p_idx = lax.broadcasted_iota(i32, (g_pad, p_pad), 1)
    na, sa, sb = cfg["seg_a_groups"], cfg["seg_a_size"], cfg["seg_b_size"]
    start = jnp.where(g_idx < na, g_idx * sa, na * sa + (g_idx - na) * sb)
    size = jnp.where(g_idx < na, sa, sb)
    member = (p_idx >= start) & (p_idx < start + size) & (g_idx < cfg["n_groups"])
    avg = jnp.where(member, 1.0 / size.astype(f32), 0.0)
    r = jnp.dot(avg, r_i, preferred_element_type=f32)                          # (G_pad, r)

    # ---- MuSigmaEncoder head, mu | sigma lane-packed
    hr = jnp.maximum(jnp.dot(r, W("ms_wr"), preferred_element_type=f32) + W("ms_br"), 0.0)
    pre = jnp.dot(hr, W("ms_w"), preferred_element_type=f32) + W("ms_b")       # (G_pad, 2z)
    lane = lax.broadcasted_iota(i32, pre.shape, 1)
    enc_out = jnp.where(lane < z_dim, pre, 0.1 + 0.9 * jax.nn.sigmoid(pre))
    out_ref[0:g_pad, 0:2 * z_dim] = enc_out

    # ---- reparameterized z feeds the decoder's first layer:
    #      z @ W1z = (mu + sigma*eps) @ W1z = ([mu|sigma] * [1|eps]) @ [[W1z],[W1z]]
    zc = (jnp.dot(enc_out * one_eps, W("dec_w1z2"), preferred_element_type=f32)
          + W("dec_b1"))                                                       # (G_pad, h)

    # ---- Decoder over all target rows; z broadcast via an iota-built 0/1 expand matmul.
    #      Columns [0, batch) are the z-driving groups (context in eval, target in train).
    r_idx = lax.broadcasted_iota(i32, (nd_pad, g_pad), 0)
    b_idx = lax.broadcasted_iota(i32, (nd_pad, g_pad), 1)
    nt = cfg["num_target"]
    sel = (b_idx < cfg["batch"]) & (r_idx >= b_idx * nt) & (r_idx < (b_idx + 1) * nt)
    expand = jnp.where(sel, 1.0, 0.0)
    hd = jnp.maximum(jnp.dot(xt, W("dec_w1x"), preferred_element_type=f32)
                     + jnp.dot(expand, zc, preferred_element_type=f32), 0.0)
    hd = jnp.maximum(jnp.dot(hd, W("dec_w2"), preferred_element_type=f32) + W("dec_b2"), 0.0)
    hd = jnp.maximum(jnp.dot(hd, W("dec_w3"), preferred_element_type=f32) + W("dec_b3"), 0.0)
    pre_y = jnp.dot(hd, W("dec_wo"), preferred_element_type=f32) + W("dec_bo")  # (Nd_pad, OUT_LANES)
    lane_y = lax.broadcasted_iota(i32, pre_y.shape, 1)
    # sigmoid/softplus computed on all lanes + iota select (free EUP/VPU filler);
    # lanes >= 2*y_dim are zero-weight padding and are never read back.
    out_ref[g_pad:g_pad + nd_pad, :] = jnp.where(
        lane_y < y_dim, pre_y, 0.1 + 0.9 * _softplus(pre_y))


# ----------------------------- fused forward wrapper --------------------------
def _np_fused_forward(params, pts_xy, x_target, eps,
                      n_groups, seg_a_groups, seg_a_size, seg_b_size):
    """Single pallas_call: encoder + aggregate + head + rsample + decoder."""
    batch, num_target, x_dim = x_target.shape
    y_dim, z_dim = Y_DIM, Z_DIM
    n_pts = pts_xy.shape[0]
    p_pad = _pad8(n_pts)
    nd_pad = _pad8(batch * num_target)
    g_pad = _pad8(n_groups)

    # ---- one packed data slab: [x|y] point rows ; x_target rows ; [1|eps] rows
    data = jnp.zeros((p_pad + nd_pad + g_pad, DATA_LANES), jnp.float32)
    data = data.at[0:n_pts, 0:x_dim + y_dim].set(pts_xy)
    data = data.at[p_pad:p_pad + batch * num_target, 0:x_dim].set(
        x_target.reshape(batch * num_target, x_dim))
    data = data.at[p_pad + nd_pad:p_pad + nd_pad + batch, 0:z_dim].set(1.0)
    data = data.at[p_pad + nd_pad:p_pad + nd_pad + batch, z_dim:2 * z_dim].set(eps)

    w_slab = _pack_weight_slab(params)

    cfg = dict(x_dim=x_dim, y_dim=y_dim, z_dim=z_dim,
               p_pad=p_pad, nd_pad=nd_pad, g_pad=g_pad,
               n_groups=n_groups, batch=batch, num_target=num_target,
               seg_a_groups=seg_a_groups, seg_a_size=seg_a_size, seg_b_size=seg_b_size)

    # grid=() : one kernel invocation; 2 input DMAs + 1 output DMA total.
    out = pl.pallas_call(
        functools.partial(np_fused_kernel, cfg=cfg),
        out_shape=jax.ShapeDtypeStruct((g_pad + nd_pad, OUT_LANES), jnp.float32),
        in_specs=[pl.BlockSpec(memory_space=pltpu.MemorySpace.VMEM),
                  pl.BlockSpec(memory_space=pltpu.MemorySpace.VMEM)],
        out_specs=pl.BlockSpec(memory_space=pltpu.MemorySpace.VMEM),
    )(data, w_slab)

    mu = out[0:n_groups, 0:z_dim]
    sigma = out[0:n_groups, z_dim:2 * z_dim]
    dec = out[g_pad:g_pad + batch * num_target, :]
    y_mu = dec[:, 0:y_dim].reshape(batch, num_target, y_dim)
    y_sigma = dec[:, y_dim:2 * y_dim].reshape(batch, num_target, y_dim)
    return y_mu, y_sigma, mu, sigma


@functools.partial(jax.jit, static_argnames=("training",))
def neural_process_forward(params, x_context, y_context, x_target,
                           y_target=None, *, training=False, rng=None):
    """
    Mirrors NeuralProcess.forward. Returns Normal-distribution parameters
    instead of torch.distributions objects:
      training=True : (y_mu, y_sigma, mu_target, sigma_target, mu_context, sigma_context)
      training=False: (y_mu, y_sigma, mu_context, sigma_context)
    The reparameterized sample z = mu + sigma * eps (rsample) uses `rng`.
    """
    if rng is None:
        rng = jax.random.PRNGKey(42)
    batch, num_target, x_dim = x_target.shape
    _, num_context, _ = x_context.shape
    y_dim = y_context.shape[-1]
    eps = jax.random.normal(rng, (batch, Z_DIM), jnp.float32)

    if training:
        # Both encoder passes (target posterior + context prior) run in the same
        # kernel call: point rows = [target points ; context points]; groups
        # 0..batch-1 are the target groups (they drive z, as in torch).
        pts_xy = jnp.concatenate(
            [jnp.concatenate([x_target, y_target], axis=-1).reshape(
                batch * num_target, x_dim + y_dim),
             jnp.concatenate([x_context, y_context], axis=-1).reshape(
                batch * num_context, x_dim + y_dim)], axis=0)
        y_mu, y_sigma, mu, sigma = _np_fused_forward(
            params, pts_xy, x_target, eps,
            n_groups=2 * batch, seg_a_groups=batch,
            seg_a_size=num_target, seg_b_size=num_context)
        return (y_mu, y_sigma,
                mu[:batch], sigma[:batch],     # q_target
                mu[batch:], sigma[batch:])     # q_context
    else:
        pts_xy = jnp.concatenate([x_context, y_context], axis=-1).reshape(
            batch * num_context, x_dim + y_dim)
        y_mu, y_sigma, mu_c, sigma_c = _np_fused_forward(
            params, pts_xy, x_target, eps,
            n_groups=batch, seg_a_groups=batch,
            seg_a_size=num_context, seg_b_size=num_context)
        return y_mu, y_sigma, mu_c, sigma_c


# ----------------------------- pure-JAX reference -----------------------------
def _ref_mu_sigma(params, x, y):
    inp = jnp.concatenate([x, y], axis=-1)
    h = jnp.maximum(inp @ params["enc_w1"] + params["enc_b1"], 0.0)
    h = jnp.maximum(h @ params["enc_w2"] + params["enc_b2"], 0.0)
    r_i = h @ params["enc_w3"] + params["enc_b3"]
    r = jnp.mean(r_i, axis=1)
    hr = jnp.maximum(r @ params["ms_wr"] + params["ms_br"], 0.0)
    mu = hr @ params["ms_wmu"] + params["ms_bmu"]
    sigma = 0.1 + 0.9 * jax.nn.sigmoid(hr @ params["ms_wsig"] + params["ms_bsig"])
    return mu, sigma


def _ref_decoder(params, x, z):
    b, n, _ = x.shape
    zb = jnp.broadcast_to(z[:, None, :], (b, n, z.shape[-1]))
    inp = jnp.concatenate([x, zb], axis=-1)
    h = jnp.maximum(inp @ params["dec_w1"] + params["dec_b1"], 0.0)
    h = jnp.maximum(h @ params["dec_w2"] + params["dec_b2"], 0.0)
    h = jnp.maximum(h @ params["dec_w3"] + params["dec_b3"], 0.0)
    y_mu = h @ params["dec_wmu"] + params["dec_bmu"]
    y_sigma = 0.1 + 0.9 * _softplus(h @ params["dec_wsig"] + params["dec_bsig"])
    return y_mu, y_sigma


def _ref_forward(params, x_context, y_context, x_target, y_target=None,
                 *, training=False, rng=None):
    if training:
        mu_t, sig_t = _ref_mu_sigma(params, x_target, y_target)
        mu_c, sig_c = _ref_mu_sigma(params, x_context, y_context)
        eps = jax.random.normal(rng, mu_t.shape, mu_t.dtype)
        z = mu_t + sig_t * eps
        y_mu, y_sig = _ref_decoder(params, x_target, z)
        return y_mu, y_sig, mu_t, sig_t, mu_c, sig_c
    mu_c, sig_c = _ref_mu_sigma(params, x_context, y_context)
    eps = jax.random.normal(rng, mu_c.shape, mu_c.dtype)
    z = mu_c + sig_c * eps
    y_mu, y_sig = _ref_decoder(params, x_target, z)
    return y_mu, y_sig, mu_c, sig_c


# ----------------------------- main -------------------------------------------
if __name__ == "__main__":
    key = jax.random.PRNGKey(0)
    k_params, k_xc, k_yc, k_xt, k_yt, k_z1, k_z2 = jax.random.split(key, 7)

    params = init_params(k_params)

    x_context = jax.random.normal(k_xc, (BATCH, NUM_CONTEXT, X_DIM), jnp.float32)
    y_context = jax.random.normal(k_yc, (BATCH, NUM_CONTEXT, Y_DIM), jnp.float32)
    x_target = jax.random.normal(k_xt, (BATCH, NUM_TARGET, X_DIM), jnp.float32)
    y_target = jax.random.normal(k_yt, (BATCH, NUM_TARGET, Y_DIM), jnp.float32)

    # ---- inference path (module in eval mode) — one fused kernel launch
    out_eval = neural_process_forward(params, x_context, y_context, x_target,
                                      training=False, rng=k_z1)
    out_eval = jax.block_until_ready(out_eval)
    ref_eval = _ref_forward(params, x_context, y_context, x_target,
                            training=False, rng=k_z1)
    for got, want in zip(out_eval, ref_eval):
        np.testing.assert_allclose(np.asarray(got), np.asarray(want),
                                   rtol=1e-5, atol=1e-5)
    y_mu, y_sigma, mu_c, sigma_c = out_eval
    assert y_mu.shape == (BATCH, NUM_TARGET, Y_DIM)
    assert y_sigma.shape == (BATCH, NUM_TARGET, Y_DIM)
    assert mu_c.shape == (BATCH, Z_DIM)
    assert sigma_c.shape == (BATCH, Z_DIM)

    # ---- training path (target posterior drives z) — also one fused launch
    out_train = neural_process_forward(params, x_context, y_context, x_target,
                                       y_target, training=True, rng=k_z2)
    out_train = jax.block_until_ready(out_train)
    ref_train = _ref_forward(params, x_context, y_context, x_target, y_target,
                             training=True, rng=k_z2)
    for got, want in zip(out_train, ref_train):
        np.testing.assert_allclose(np.asarray(got), np.asarray(want),
                                   rtol=1e-5, atol=1e-5)

    print("KERNEL_OK")
</pallas_src>

<mosaic_0001>
module attributes {stable_mosaic.version = 11 : i64} {
  func.func @np_fused_kernel(%arg0: memref<56x16xf32, #tpu.memory_space<vmem>>, %arg1: memref<280x32xf32, #tpu.memory_space<vmem>>, %arg2: memref<40x16xf32, #tpu.memory_space<vmem>>) attributes {dimension_semantics = [], scalar_prefetch = 0 : i64, scratch_operands = 0 : i64, tpu.core_type = #tpu.core_type<tc>} {
    %c0 = arith.constant 0 : index
    %c0_0 = arith.constant 0 : index
    %0 = vector.load %arg0[%c0, %c0_0] : memref<56x16xf32, #tpu.memory_space<vmem>>, vector<16x3xf32>
    %c16 = arith.constant 16 : index
    %c0_1 = arith.constant 0 : index
    %1 = vector.load %arg0[%c16, %c0_1] : memref<56x16xf32, #tpu.memory_space<vmem>>, vector<32x2xf32>
    %c48 = arith.constant 48 : index
    %c0_2 = arith.constant 0 : index
    %2 = vector.load %arg0[%c48, %c0_2] : memref<56x16xf32, #tpu.memory_space<vmem>>, vector<8x16xf32>
    %c0_3 = arith.constant 0 : index
    %c0_4 = arith.constant 0 : index
    %3 = vector.load %arg1[%c0_3, %c0_4] : memref<280x32xf32, #tpu.memory_space<vmem>>, vector<3x32xf32>
    %cst = arith.constant dense<0.000000e+00> : vector<16x32xf32>
    %4 = tpu.matmul %0, %3, %cst {dimension_numbers = #tpu.dot_dimension_numbers<[1], [0], [0], [1], [0, 0, 1, 1], [], []>} : vector<16x3xf32>, vector<3x32xf32>, vector<16x32xf32> -> vector<16x32xf32>
    %c8 = arith.constant 8 : index
    %c0_5 = arith.constant 0 : index
    %5 = vector.load %arg1[%c8, %c0_5] : memref<280x32xf32, #tpu.memory_space<vmem>>, vector<1x32xf32>
    %6 = vector.broadcast %5 : vector<1x32xf32> to vector<16x32xf32>
    %7 = arith.addf %4, %6 : vector<16x32xf32>
    %cst_6 = arith.constant 0.000000e+00 : f32
    %8 = vector.broadcast %cst_6 : f32 to vector<16x32xf32>
    %9 = arith.maximumf %7, %8 : vector<16x32xf32>
    %c16_7 = arith.constant 16 : index
    %c0_8 = arith.constant 0 : index
    %10 = vector.load %arg1[%c16_7, %c0_8] : memref<280x32xf32, #tpu.memory_space<vmem>>, vector<32x32xf32>
    %cst_9 = arith.constant dense<0.000000e+00> : vector<16x32xf32>
    %11 = tpu.matmul %9, %10, %cst_9 {dimension_numbers = #tpu.dot_dimension_numbers<[1], [0], [0], [1], [0, 0, 1, 1], [], []>} : vector<16x32xf32>, vector<32x32xf32>, vector<16x32xf32> -> vector<16x32xf32>
    %c48_10 = arith.constant 48 : index
    %c0_11 = arith.constant 0 : index
    %12 = vector.load %arg1[%c48_10, %c0_11] : memref<280x32xf32, #tpu.memory_space<vmem>>, vector<1x32xf32>
    %13 = vector.broadcast %12 : vector<1x32xf32> to vector<16x32xf32>
    %14 = arith.addf %11, %13 : vector<16x32xf32>
    %cst_12 = arith.constant 0.000000e+00 : f32
    %15 = vector.broadcast %cst_12 : f32 to vector<16x32xf32>
    %16 = arith.maximumf %14, %15 : vector<16x32xf32>
    %c56 = arith.constant 56 : index
    %c0_13 = arith.constant 0 : index
    %17 = vector.load %arg1[%c56, %c0_13] : memref<280x32xf32, #tpu.memory_space<vmem>>, vector<32x8xf32>
    %cst_14 = arith.constant dense<0.000000e+00> : vector<16x8xf32>
    %18 = tpu.matmul %16, %17, %cst_14 {dimension_numbers = #tpu.dot_dimension_numbers<[1], [0], [0], [1], [0, 0, 1, 1], [], []>} : vector<16x32xf32>, vector<32x8xf32>, vector<16x8xf32> -> vector<16x8xf32>
    %c88 = arith.constant 88 : index
    %c0_15 = arith.constant 0 : index
    %19 = vector.load %arg1[%c88, %c0_15] : memref<280x32xf32, #tpu.memory_space<vmem>>, vector<1x8xf32>
    %20 = vector.broadcast %19 : vector<1x8xf32> to vector<16x8xf32>
    %21 = arith.addf %18, %20 : vector<16x8xf32>
    %22 = tpu.iota {dimensions = array<i32: 0>} : vector<8x16xi32>
    %23 = tpu.iota {dimensions = array<i32: 1>} : vector<8x16xi32>
    %c2_i32 = arith.constant 2 : i32
    %24 = vector.broadcast %c2_i32 : i32 to vector<8x16xi32>
    %25 = arith.cmpi slt, %22, %24 : vector<8x16xi32>
    %c8_i32 = arith.constant 8 : i32
    %26 = vector.broadcast %c8_i32 : i32 to vector<8x16xi32>
    %27 = arith.muli %22, %26 : vector<8x16xi32>
    %c2_i32_16 = arith.constant 2 : i32
    %28 = vector.broadcast %c2_i32_16 : i32 to vector<8x16xi32>
    %29 = arith.subi %22, %28 : vector<8x16xi32>
    %c8_i32_17 = arith.constant 8 : i32
    %30 = vector.broadcast %c8_i32_17 : i32 to vector<8x16xi32>
    %31 = arith.muli %29, %30 : vector<8x16xi32>
    %c16_i32 = arith.constant 16 : i32
    %32 = vector.broadcast %c16_i32 : i32 to vector<8x16xi32>
    %33 = arith.addi %32, %31 : vector<8x16xi32>
    %34 = arith.select %25, %27, %33 : vector<8x16xi1>, vector<8x16xi32>
    %c2_i32_18 = arith.constant 2 : i32
    %35 = vector.broadcast %c2_i32_18 : i32 to vector<8x16xi32>
    %36 = arith.cmpi slt, %22, %35 : vector<8x16xi32>
    %c8_i32_19 = arith.constant 8 : i32
    %c8_i32_20 = arith.constant 8 : i32
    %37 = vector.broadcast %c8_i32_19 : i32 to vector<8x16xi32>
    %38 = vector.broadcast %c8_i32_20 : i32 to vector<8x16xi32>
    %39 = arith.select %36, %37, %38 : vector<8x16xi1>, vector<8x16xi32>
    %40 = arith.cmpi sge, %23, %34 : vector<8x16xi32>
    %41 = arith.addi %34, %39 : vector<8x16xi32>
    %42 = arith.cmpi slt, %23, %41 : vector<8x16xi32>
    %43 = arith.andi %40, %42 : vector<8x16xi1>
    %c2_i32_21 = arith.constant 2 : i32
    %44 = vector.broadcast %c2_i32_21 : i32 to vector<8x16xi32>
    %45 = arith.cmpi slt, %22, %44 : vector<8x16xi32>
    %46 = arith.andi %43, %45 : vector<8x16xi1>
    %47 = arith.sitofp %39 : vector<8x16xi32> to vector<8x16xf32>
    %cst_22 = arith.constant 1.000000e+00 : f32
    %48 = vector.broadcast %cst_22 : f32 to vector<8x16xf32>
    %49 = arith.divf %48, %47 : vector<8x16xf32>
    %cst_23 = arith.constant 0.000000e+00 : f32
    %50 = vector.broadcast %cst_23 : f32 to vector<8x16xf32>
    %51 = arith.select %46, %49, %50 : vector<8x16xi1>, vector<8x16xf32>
    %cst_24 = arith.constant dense<0.000000e+00> : vector<8x8xf32>
    %52 = tpu.matmul %51, %21, %cst_24 {dimension_numbers = #tpu.dot_dimension_numbers<[1], [0], [0], [1], [0, 0, 1, 1], [], []>} : vector<8x16xf32>, vector<16x8xf32>, vector<8x8xf32> -> vector<8x8xf32>
    %c96 = arith.constant 96 : index
    %c0_25 = arith.constant 0 : index
    %53 = vector.load %arg1[%c96, %c0_25] : memref<280x32xf32, #tpu.memory_space<vmem>>, vector<8x8xf32>
    %cst_26 = arith.constant dense<0.000000e+00> : vector<8x8xf32>
    %54 = tpu.matmul %52, %53, %cst_26 {dimension_numbers = #tpu.dot_dimension_numbers<[1], [0], [0], [1], [0, 0, 1, 1], [], []>} : vector<8x8xf32>, vector<8x8xf32>, vector<8x8xf32> -> vector<8x8xf32>
    %c104 = arith.constant 104 : index
    %c0_27 = arith.constant 0 : index
    %55 = vector.load %arg1[%c104, %c0_27] : memref<280x32xf32, #tpu.memory_space<vmem>>, vector<1x8xf32>
    %56 = vector.broadcast %55 : vector<1x8xf32> to vector<8x8xf32>
    %57 = arith.addf %54, %56 : vector<8x8xf32>
    %cst_28 = arith.constant 0.000000e+00 : f32
    %58 = vector.broadcast %cst_28 : f32 to vector<8x8xf32>
    %59 = arith.maximumf %57, %58 : vector<8x8xf32>
    %c112 = arith.constant 112 : index
    %c0_29 = arith.constant 0 : index
    %60 = vector.load %arg1[%c112, %c0_29] : memref<280x32xf32, #tpu.memory_space<vmem>>, vector<8x16xf32>
    %cst_30 = arith.constant dense<0.000000e+00> : vector<8x16xf32>
    %61 = tpu.matmul %59, %60, %cst_30 {dimension_numbers = #tpu.dot_dimension_numbers<[1], [0], [0], [1], [0, 0, 1, 1], [], []>} : vector<8x8xf32>, vector<8x16xf32>, vector<8x16xf32> -> vector<8x16xf32>
    %c120 = arith.constant 120 : index
    %c0_31 = arith.constant 0 : index
    %62 = vector.load %arg1[%c120, %c0_31] : memref<280x32xf32, #tpu.memory_space<vmem>>, vector<1x16xf32>
    %63 = vector.broadcast %62 : vector<1x16xf32> to vector<8x16xf32>
    %64 = arith.addf %61, %63 : vector<8x16xf32>
    %65 = tpu.iota {dimensions = array<i32: 1>} : vector<8x16xi32>
    %c8_i32_32 = arith.constant 8 : i32
    %66 = vector.broadcast %c8_i32_32 : i32 to vector<8x16xi32>
    %67 = arith.cmpi slt, %65, %66 : vector<8x16xi32>
    %68 = arith.negf %64 : vector<8x16xf32>
    %69 = math.exp %68 : vector<8x16xf32>
    %cst_33 = arith.constant 1.000000e+00 : f32
    %70 = vector.broadcast %cst_33 : f32 to vector<8x16xf32>
    %71 = arith.addf %70, %69 : vector<8x16xf32>
    %72 = arith.divf %70, %71 : vector<8x16xf32>
    %cst_34 = arith.constant 0.899999976 : f32
    %73 = vector.broadcast %cst_34 : f32 to vector<8x16xf32>
    %74 = arith.mulf %73, %72 : vector<8x16xf32>
    %cst_35 = arith.constant 1.000000e-01 : f32
    %75 = vector.broadcast %cst_35 : f32 to vector<8x16xf32>
    %76 = arith.addf %75, %74 : vector<8x16xf32>
    %77 = arith.select %67, %64, %76 : vector<8x16xi1>, vector<8x16xf32>
    %c0_36 = arith.constant 0 : index
    %c0_37 = arith.constant 0 : index
    %78 = vector.load %arg2[%c0_36, %c0_37] : memref<40x16xf32, #tpu.memory_space<vmem>>, vector<8x16xf32>
    tpu.vector_store %arg2[%c0_36, %c0_37], %77 {strides = array<i32>} : memref<40x16xf32, #tpu.memory_space<vmem>>, vector<8x16xf32>,
    %79 = arith.mulf %77, %2 : vector<8x16xf32>
    %c136 = arith.constant 136 : index
    %c0_38 = arith.constant 0 : index
    %80 = vector.load %arg1[%c136, %c0_38] : memref<280x32xf32, #tpu.memory_space<vmem>>, vector<16x32xf32>
    %cst_39 = arith.constant dense<0.000000e+00> : vector<8x32xf32>
    %81 = tpu.matmul %79, %80, %cst_39 {dimension_numbers = #tpu.dot_dimension_numbers<[1], [0], [0], [1], [0, 0, 1, 1], [], []>} : vector<8x16xf32>, vector<16x32xf32>, vector<8x32xf32> -> vector<8x32xf32>
    %c152 = arith.constant 152 : index
    %c0_40 = arith.constant 0 : index
    %82 = vector.load %arg1[%c152, %c0_40] : memref<280x32xf32, #tpu.memory_space<vmem>>, vector<1x32xf32>
    %83 = vector.broadcast %82 : vector<1x32xf32> to vector<8x32xf32>
    %84 = arith.addf %81, %83 : vector<8x32xf32>
    %85 = tpu.iota {dimensions = array<i32: 0>} : vector<32x8xi32>
    %86 = tpu.iota {dimensions = array<i32: 1>} : vector<32x8xi32>
    %c2_i32_41 = arith.constant 2 : i32
    %87 = vector.broadcast %c2_i32_41 : i32 to vector<32x8xi32>
    %88 = arith.cmpi slt, %86, %87 : vector<32x8xi32>
    %c16_i32_42 = arith.constant 16 : i32
    %89 = vector.broadcast %c16_i32_42 : i32 to vector<32x8xi32>
    %90 = arith.muli %86, %89 : vector<32x8xi32>
    %91 = arith.cmpi sge, %85, %90 : vector<32x8xi32>
    %92 = arith.andi %88, %91 : vector<32x8xi1>
    %c1_i32 = arith.constant 1 : i32
    %93 = vector.broadcast %c1_i32 : i32 to vector<32x8xi32>
    %94 = arith.addi %86, %93 : vector<32x8xi32>
    %c16_i32_43 = arith.constant 16 : i32
    %95 = vector.broadcast %c16_i32_43 : i32 to vector<32x8xi32>
    %96 = arith.muli %94, %95 : vector<32x8xi32>
    %97 = arith.cmpi slt, %85, %96 : vector<32x8xi32>
    %98 = arith.andi %92, %97 : vector<32x8xi1>
    %cst_44 = arith.constant 1.000000e+00 : f32
    %cst_45 = arith.constant 0.000000e+00 : f32
    %99 = vector.broadcast %cst_44 : f32 to vector<32x8xf32>
    %100 = vector.broadcast %cst_45 : f32 to vector<32x8xf32>
    %101 = arith.select %98, %99, %100 : vector<32x8xi1>, vector<32x8xf32>
    %c128 = arith.constant 128 : index
    %c0_46 = arith.constant 0 : index
    %102 = vector.load %arg1[%c128, %c0_46] : memref<280x32xf32, #tpu.memory_space<vmem>>, vector<2x32xf32>
    %cst_47 = arith.constant dense<0.000000e+00> : vector<32x32xf32>
    %103 = tpu.matmul %1, %102, %cst_47 {dimension_numbers = #tpu.dot_dimension_numbers<[1], [0], [0], [1], [0, 0, 1, 1], [], []>} : vector<32x2xf32>, vector<2x32xf32>, vector<32x32xf32> -> vector<32x32xf32>
    %cst_48 = arith.constant dense<0.000000e+00> : vector<32x32xf32>
    %104 = tpu.matmul %101, %84, %cst_48 {dimension_numbers = #tpu.dot_dimension_numbers<[1], [0], [0], [1], [0, 0, 1, 1], [], []>} : vector<32x8xf32>, vector<8x32xf32>, vector<32x32xf32> -> vector<32x32xf32>
    %105 = arith.addf %103, %104 : vector<32x32xf32>
    %cst_49 = arith.constant 0.000000e+00 : f32
    %106 = vector.broadcast %cst_49 : f32 to vector<32x32xf32>
    %107 = arith.maximumf %105, %106 : vector<32x32xf32>
    %c160 = arith.constant 160 : index
    %c0_50 = arith.constant 0 : index
    %108 = vector.load %arg1[%c160, %c0_50] : memref<280x32xf32, #tpu.memory_space<vmem>>, vector<32x32xf32>
    %cst_51 = arith.constant dense<0.000000e+00> : vector<32x32xf32>
    %109 = tpu.matmul %107, %108, %cst_51 {dimension_numbers = #tpu.dot_dimension_numbers<[1], [0], [0], [1], [0, 0, 1, 1], [], []>} : vector<32x32xf32>, vector<32x32xf32>, vector<32x32xf32> -> vector<32x32xf32>
    %c192 = arith.constant 192 : index
    %c0_52 = arith.constant 0 : index
    %110 = vector.load %arg1[%c192, %c0_52] : memref<280x32xf32, #tpu.memory_space<vmem>>, vector<1x32xf32>
    %111 = vector.broadcast %110 : vector<1x32xf32> to vector<32x32xf32>
    %112 = arith.addf %109, %111 : vector<32x32xf32>
    %cst_53 = arith.constant 0.000000e+00 : f32
    %113 = vector.broadcast %cst_53 : f32 to vector<32x32xf32>
    %114 = arith.maximumf %112, %113 : vector<32x32xf32>
    %c200 = arith.constant 200 : index
    %c0_54 = arith.constant 0 : index
    %115 = vector.load %arg1[%c200, %c0_54] : memref<280x32xf32, #tpu.memory_space<vmem>>, vector<32x32xf32>
    %cst_55 = arith.constant dense<0.000000e+00> : vector<32x32xf32>
    %116 = tpu.matmul %114, %115, %cst_55 {dimension_numbers = #tpu.dot_dimension_numbers<[1], [0], [0], [1], [0, 0, 1, 1], [], []>} : vector<32x32xf32>, vector<32x32xf32>, vector<32x32xf32> -> vector<32x32xf32>
    %c232 = arith.constant 232 : index
    %c0_56 = arith.constant 0 : index
    %117 = vector.load %arg1[%c232, %c0_56] : memref<280x32xf32, #tpu.memory_space<vmem>>, vector<1x32xf32>
    %118 = vector.broadcast %117 : vector<1x32xf32> to vector<32x32xf32>
    %119 = arith.addf %116, %118 : vector<32x32xf32>
    %cst_57 = arith.constant 0.000000e+00 : f32
    %120 = vector.broadcast %cst_57 : f32 to vector<32x32xf32>
    %121 = arith.maximumf %119, %120 : vector<32x32xf32>
    %c240 = arith.constant 240 : index
    %c0_58 = arith.constant 0 : index
    %122 = vector.load %arg1[%c240, %c0_58] : memref<280x32xf32, #tpu.memory_space<vmem>>, vector<32x16xf32>
    %cst_59 = arith.constant dense<0.000000e+00> : vector<32x16xf32>
    %123 = tpu.matmul %121, %122, %cst_59 {dimension_numbers = #tpu.dot_dimension_numbers<[1], [0], [0], [1], [0, 0, 1, 1], [], []>} : vector<32x32xf32>, vector<32x16xf32>, vector<32x16xf32> -> vector<32x16xf32>
    %c272 = arith.constant 272 : index
    %c0_60 = arith.constant 0 : index
    %124 = vector.load %arg1[%c272, %c0_60] : memref<280x32xf32, #tpu.memory_space<vmem>>, vector<1x16xf32>
    %125 = vector.broadcast %124 : vector<1x16xf32> to vector<32x16xf32>
    %126 = arith.addf %123, %125 : vector<32x16xf32>
    %127 = tpu.iota {dimensions = array<i32: 1>} : vector<32x16xi32>
    %c1_i32_61 = arith.constant 1 : i32
    %128 = vector.broadcast %c1_i32_61 : i32 to vector<32x16xi32>
    %129 = arith.cmpi slt, %127, %128 : vector<32x16xi32>
    %cst_62 = arith.constant 2.000000e+01 : f32
    %130 = vector.broadcast %cst_62 : f32 to vector<32x16xf32>
    %131 = arith.cmpf ogt, %126, %130 : vector<32x16xf32>
    %cst_63 = arith.constant 0.000000e+00 : f32
    %132 = vector.broadcast %cst_63 : f32 to vector<32x16xf32>
    %133 = arith.select %131, %132, %126 : vector<32x16xi1>, vector<32x16xf32>
    %cst_64 = arith.constant 2.000000e+01 : f32
    %134 = vector.broadcast %cst_64 : f32 to vector<32x16xf32>
    %135 = arith.cmpf ogt, %126, %134 : vector<32x16xf32>
    %136 = math.exp %133 : vector<32x16xf32>
    %137 = math.log1p %136 : vector<32x16xf32>
    %138 = arith.select %135, %126, %137 : vector<32x16xi1>, vector<32x16xf32>
    %cst_65 = arith.constant 0.899999976 : f32
    %139 = vector.broadcast %cst_65 : f32 to vector<32x16xf32>
    %140 = arith.mulf %139, %138 : vector<32x16xf32>
    %cst_66 = arith.constant 1.000000e-01 : f32
    %141 = vector.broadcast %cst_66 : f32 to vector<32x16xf32>
    %142 = arith.addf %141, %140 : vector<32x16xf32>
    %143 = arith.select %129, %126, %142 : vector<32x16xi1>, vector<32x16xf32>
    %c8_67 = arith.constant 8 : index
    %c0_68 = arith.constant 0 : index
    %144 = vector.load %arg2[%c8_67, %c0_68] : memref<40x16xf32, #tpu.memory_space<vmem>>, vector<32x16xf32>
    tpu.vector_store %arg2[%c8_67, %c0_68], %143 {strides = array<i32>} : memref<40x16xf32, #tpu.memory_space<vmem>>, vector<32x16xf32>,
    return
  }
}

</mosaic_0001>

<llo_original>
// kernel: neural_process_forward.1
$region0: #{neural_process_forward.1}
  #allocation0 [shape = 'u32[]', space=smem, size = 0x4, offset = 0x4, fixed_abs, tag = 'smem constant byte address 0x4 - core index']
  #allocation1 [shape = 'u32[144,128]{1,0:T(1,128)}', space=vmem, size = 0x12000, scoped, tag = 'internal scratch']
  %s0 = inlined_call_operand.vmem [shape: f32[56,16], index: 0, kind: input, shape index: {}]
  %s1 = inlined_call_operand.vmem [shape: f32[280,32], index: 1, kind: input, shape index: {}]
  %s2 = inlined_call_operand.vmem [shape: f32[40,16], index: 2, kind: output, shape index: {}]
  %s3 = sld [smem:[#allocation0]]
  $region18: #{neural_process_forward.1} parent=0
    _
  %s5 = ssub.s32 1, %s3
  %s6 = scalar_select 0, %s5, %s3
  // Predicated region
  $region2: #{neural_process_forward.1} parent=0 // pred_check
    _
  $region3: #{neural_process_forward.1} parent=0 // pred_check_branch
    %8 = sbr.rel (0) target = $region5
  $region4: #{neural_process_forward.1} parent=0 // pred_region
    _
  $region5: #{neural_process_forward.1} parent=0 // pred_fallthru
    _
  // Predicated region
  $region6: #{neural_process_forward.1} parent=0 // pred_check
    _
  $region7: #{neural_process_forward.1} parent=0 // pred_check_branch
    %10 = sbr.rel (0) target = $region9
  $region8: #{neural_process_forward.1} parent=0 // pred_region
    _
  $region9: #{neural_process_forward.1} parent=0 // pred_fallthru
    _
  %v11 = vld [vmem:[%s0] sm:$0xff]
  %v12 = vld [vmem:[%s0 + $0x8] sm:$0xff]
  %v13 = vld [vmem:[%s0 + $0x10] sm:$0xff]
  %v14 = vld [vmem:[%s0 + $0x18] sm:$0xff]
  %v15 = vld [vmem:[%s0 + $0x20] sm:$0xff]
  %v16 = vld [vmem:[%s0 + $0x28] sm:$0xff]
  %v17 = vld [vmem:[%s0 + $0x30] sm:$0xff]
  %v18 = vld [vmem:[%s1] sm:$0x7]
  %v19 = vld [vmem:[%s1 + $0x8] sm:$0x1]
  %v20 = vlaneseq
  %v21 = vshrl.u32 %v20, 7
  %v22 = vsub.s32 0, %v21
  %v23 = vrot.slane %v19, %v22
  %vm24 = vcmask 23552
  %v26 = vsel %vm24, %v11, 0
  %v29 = vsel %vm24, %v12, 0
  %vm31 = vcmask 1042432
  %v33 = vsel %vm31, %v18, 0
  %35 = vmatprep.subr.mxu0 0.0
  %36 = vmatpush1.msra.mxu0 %v33
  %37 = vmatprep.subr.mxu0 0.0
  %38 = vmatpush1.msra.mxu0 0.0
  %39 = vmatprep.subr.mxu0 0.0
  %40 = vmatpush1.msra.mxu0 0.0
  %41 = vmatprep.subr.mxu0 0.0
  %42 = vmatpush1.msra.mxu0 0.0
  %43 = vmatprep.subr.mxu0 0.0
  %44 = vmatpush1.msra.mxu0 0.0
  %45 = vmatprep.subr.mxu0 0.0
  %46 = vmatpush1.msra.mxu0 0.0
  %47 = vmatprep.subr.mxu0 0.0
  %48 = vmatpush1.msra.mxu0 0.0
  %49 = vmatprep.subr.mxu0 0.0
  %50 = vmatpush1.msra.mxu0 0.0
  %51 = vmatprep.subr.mxu0 0.0
  %52 = vmatpush1.msra.mxu0 0.0
  %53 = vmatprep.subr.mxu0 0.0
  %54 = vmatpush1.msra.mxu0 0.0
  %55 = vmatprep.subr.mxu0 0.0
  %56 = vmatpush1.msra.mxu0 0.0
  %57 = vmatprep.subr.mxu0 0.0
  %58 = vmatpush1.msra.mxu0 0.0
  %59 = vmatprep.subr.mxu0 0.0
  %60 = vmatpush1.msra.mxu0 0.0
  %61 = vmatprep.subr.mxu0 0.0
  %62 = vmatpush1.msra.mxu0 0.0
  %63 = vmatprep.subr.mxu0 0.0
  %64 = vmatpush1.msra.mxu0 0.0
  %65 = vmatprep.subr.mxu0 0.0
  %66 = vmatpush1.msra.mxu0 0.0
  %67 = vmatprep.subr.mxu0 0.0
  %68 = vmatpush1.msra.mxu0 0.0
  %69 = vmatprep.subr.mxu0 0.0
  %70 = vmatpush1.msra.mxu0 0.0
  %71 = vmatprep.subr.mxu0 0.0
  %72 = vmatpush1.msra.mxu0 0.0
  %73 = vmatprep.subr.mxu0 0.0
  %74 = vmatpush1.msra.mxu0 0.0
  %75 = vmatprep.subr.mxu0 0.0
  %76 = vmatpush1.msra.mxu0 0.0
  %77 = vmatprep.subr.mxu0 0.0
  %78 = vmatpush1.msra.mxu0 0.0
  %79 = vmatprep.subr.mxu0 0.0
  %80 = vmatpush1.msra.mxu0 0.0
  %81 = vmatprep.subr.mxu0 0.0
  %82 = vmatpush1.msra.mxu0 0.0
  %83 = vmatprep.subr.mxu0 0.0
  %84 = vmatpush1.msra.mxu0 0.0
  %85 = vmatprep.subr.mxu0 0.0
  %86 = vmatpush1.msra.mxu0 0.0
  %87 = vmatprep.subr.mxu0 0.0
  %88 = vmatpush1.msra.mxu0 0.0
  %89 = vmatprep.subr.mxu0 0.0
  %90 = vmatpush1.msra.mxu0 0.0
  %91 = vmatprep.subr.mxu0 0.0
  %92 = vmatpush1.msra.mxu0 0.0
  %93 = vmatprep.subr.mxu0 0.0
  %94 = vmatpush1.msra.mxu0 0.0
  %95 = vmatprep.subr.mxu0 0.0
  %96 = vmatpush1.msra.mxu0 0.0
  %97 = vmatprep.subr.mxu0 0.0
  %98 = vmatpush1.msra.mxu0 0.0
  %99 = vmatprep.mubr.f32.mxu0 0.0
  %100 = vmatmul.mubr.f32.gmra.mrb[0].mxu0 %v26
  %v101 = vpop.f32.mrb[0].mxu0
  %v102 = vadd.f32 %v23, %v101
  %v103 = vpop.f32.mrb[0].mxu0
  %104 = vmatprep.mubr.f32.mxu0 0.0
  %105 = vmatmul.mubr.f32.gmra.mrb[0].mxu0 %v29
  %v106 = vpop.f32.mrb[0].mxu0
  %v107 = vadd.f32 %v23, %v106
  %v108 = vpop.f32.mrb[0].mxu0
  %109 = vdwg.mxu0
  %v110 = vmax.f32 %v102, 0.0
  %v111 = vmax.f32 %v107, 0.0
  %v112 = vld [vmem:[%s1 + $0x10] sm:$0xff]
  %v113 = vld [vmem:[%s1 + $0x18] sm:$0xff]
  %v114 = vld [vmem:[%s1 + $0x20] sm:$0xff]
  %v115 = vld [vmem:[%s1 + $0x28] sm:$0xff]
  %v116 = vld [vmem:[%s1 + $0x30] sm:$0x1]
  %v117 = vlaneseq
  %v118 = vshrl.u32 %v117, 7
  %v119 = vsub.s32 0, %v118
  %v120 = vrot.slane %v116, %v119
  %vm121 = vcmask 261120
  %v123 = vsel %vm121, %v110, 0
  %v126 = vsel %vm121, %v111, 0
  %128 = vmatprep.subr.mxu0 0.0
  %129 = vmatpush1.msra.mxu0 %v112
  %130 = vmatprep.subr.mxu0 0.0
  %131 = vmatpush1.msra.mxu0 %v113
  %132 = vmatprep.subr.mxu0 0.0
  %133 = vmatpush1.msra.mxu0 %v114
  %134 = vmatprep.subr.mxu0 0.0
  %135 = vmatpush1.msra.mxu0 %v115
  %136 = vmatprep.subr.mxu0 0.0
  %137 = vmatpush1.msra.mxu0 0.0
  %138 = vmatprep.subr.mxu0 0.0
  %139 = vmatpush1.msra.mxu0 0.0
  %140 = vmatprep.subr.mxu0 0.0
  %141 = vmatpush1.msra.mxu0 0.0
  %142 = vmatprep.subr.mxu0 0.0
  %143 = vmatpush1.msra.mxu0 0.0
  %144 = vmatprep.subr.mxu0 0.0
  %145 = vmatpush1.msra.mxu0 0.0
  %146 = vmatprep.subr.mxu0 0.0
  %147 = vmatpush1.msra.mxu0 0.0
  %148 = vmatprep.subr.mxu0 0.0
  %149 = vmatpush1.msra.mxu0 0.0
  %150 = vmatprep.subr.mxu0 0.0
  %151 = vmatpush1.msra.mxu0 0.0
  %152 = vmatprep.subr.mxu0 0.0
  %153 = vmatpush1.msra.mxu0 0.0
  %154 = vmatprep.subr.mxu0 0.0
  %155 = vmatpush1.msra.mxu0 0.0
  %156 = vmatprep.subr.mxu0 0.0
  %157 = vmatpush1.msra.mxu0 0.0
  %158 = vmatprep.subr.mxu0 0.0
  %159 = vmatpush1.msra.mxu0 0.0
  %160 = vmatprep.subr.mxu0 0.0
  %161 = vmatpush1.msra.mxu0 0.0
  %162 = vmatprep.subr.mxu0 0.0
  %163 = vmatpush1.msra.mxu0 0.0
  %164 = vmatprep.subr.mxu0 0.0
  %165 = vmatpush1.msra.mxu0 0.0
  %166 = vmatprep.subr.mxu0 0.0
  %167 = vmatpush1.msra.mxu0 0.0
  %168 = vmatprep.subr.mxu0 0.0
  %169 = vmatpush1.msra.mxu0 0.0
  %170 = vmatprep.subr.mxu0 0.0
  %171 = vmatpush1.msra.mxu0 0.0
  %172 = vmatprep.subr.mxu0 0.0
  %173 = vmatpush1.msra.mxu0 0.0
  %174 = vmatprep.subr.mxu0 0.0
  %175 = vmatpush1.msra.mxu0 0.0
  %176 = vmatprep.subr.mxu0 0.0
  %177 = vmatpush1.msra.mxu0 0.0
  %178 = vmatprep.subr.mxu0 0.0
  %179 = vmatpush1.msra.mxu0 0.0
  %180 = vmatprep.subr.mxu0 0.0
  %181 = vmatpush1.msra.mxu0 0.0
  %182 = vmatprep.subr.mxu0 0.0
  %183 = vmatpush1.msra.mxu0 0.0
  %184 = vmatprep.subr.mxu0 0.0
  %185 = vmatpush1.msra.mxu0 0.0
  %186 = vmatprep.subr.mxu0 0.0
  %187 = vmatpush1.msra.mxu0 0.0
  %188 = vmatprep.subr.mxu0 0.0
  %189 = vmatpush1.msra.mxu0 0.0
  %190 = vmatprep.subr.mxu0 0.0
  %191 = vmatpush1.msra.mxu0 0.0
  %192 = vmatprep.mubr.f32.mxu0 0.0
  %193 = vmatmul.mubr.f32.gmra.mrb[0].mxu0 %v123
  %v194 = vpop.f32.mrb[0].mxu0
  %v195 = vadd.f32 %v120, %v194
  %v196 = vpop.f32.mrb[0].mxu0
  %197 = vmatprep.mubr.f32.mxu0 0.0
  %198 = vmatmul.mubr.f32.gmra.mrb[0].mxu0 %v126
  %v199 = vpop.f32.mrb[0].mxu0
  %v200 = vadd.f32 %v120, %v199
  %v201 = vpop.f32.mrb[0].mxu0
  %202 = vdwg.mxu0
  %v203 = vmax.f32 %v195, 0.0
  %v204 = vmax.f32 %v200, 0.0
  %v205 = vld [vmem:[%s1 + $0x38] sm:$0xff]
  %v206 = vld [vmem:[%s1 + $0x40] sm:$0xff]
  %v207 = vld [vmem:[%s1 + $0x48] sm:$0xff]
  %v208 = vld [vmem:[%s1 + $0x50] sm:$0xff]
  %v209 = vld [vmem:[%s1 + $0x58] sm:$0x1]
  %v210 = vlaneseq
  %v211 = vshrl.u32 %v210, 7
  %v212 = vsub.s32 0, %v211
  %v213 = vrot.slane %v209, %v212
  %v215 = vsel %vm121, %v203, 0
  %v218 = vsel %vm121, %v204, 0
  %220 = vmatprep.subr.mxu0 0.0
  %221 = vmatpush1.msra.mxu0 %v205
  %222 = vmatprep.subr.mxu0 0.0
  %223 = vmatpush1.msra.mxu0 %v206
  %224 = vmatprep.subr.mxu0 0.0
  %225 = vmatpush1.msra.mxu0 %v207
  %226 = vmatprep.subr.mxu0 0.0
  %227 = vmatpush1.msra.mxu0 %v208
  %228 = vmatprep.subr.mxu0 0.0
  %229 = vmatpush1.msra.mxu0 0.0
  %230 = vmatprep.subr.mxu0 0.0
  %231 = vmatpush1.msra.mxu0 0.0
  %232 = vmatprep.subr.mxu0 0.0
  %233 = vmatpush1.msra.mxu0 0.0
  %234 = vmatprep.subr.mxu0 0.0
  %235 = vmatpush1.msra.mxu0 0.0
  %236 = vmatprep.subr.mxu0 0.0
  %237 = vmatpush1.msra.mxu0 0.0
  %238 = vmatprep.subr.mxu0 0.0
  %239 = vmatpush1.msra.mxu0 0.0
  %240 = vmatprep.subr.mxu0 0.0
  %241 = vmatpush1.msra.mxu0 0.0
  %242 = vmatprep.subr.mxu0 0.0
  %243 = vmatpush1.msra.mxu0 0.0
  %244 = vmatprep.subr.mxu0 0.0
  %245 = vmatpush1.msra.mxu0 0.0
  %246 = vmatprep.subr.mxu0 0.0
  %247 = vmatpush1.msra.mxu0 0.0
  %248 = vmatprep.subr.mxu0 0.0
  %249 = vmatpush1.msra.mxu0 0.0
  %250 = vmatprep.subr.mxu0 0.0
  %251 = vmatpush1.msra.mxu0 0.0
  %252 = vmatprep.subr.mxu0 0.0
  %253 = vmatpush1.msra.mxu0 0.0
  %254 = vmatprep.subr.mxu0 0.0
  %255 = vmatpush1.msra.mxu0 0.0
  %256 = vmatprep.subr.mxu0 0.0
  %257 = vmatpush1.msra.mxu0 0.0
  %258 = vmatprep.subr.mxu0 0.0
  %259 = vmatpush1.msra.mxu0 0.0
  %260 = vmatprep.subr.mxu0 0.0
  %261 = vmatpush1.msra.mxu0 0.0
  %262 = vmatprep.subr.mxu0 0.0
  %263 = vmatpush1.msra.mxu0 0.0
  %264 = vmatprep.subr.mxu0 0.0
  %265 = vmatpush1.msra.mxu0 0.0
  %266 = vmatprep.subr.mxu0 0.0
  %267 = vmatpush1.msra.mxu0 0.0
  %268 = vmatprep.subr.mxu0 0.0
  %269 = vmatpush1.msra.mxu0 0.0
  %270 = vmatprep.subr.mxu0 0.0
  %271 = vmatpush1.msra.mxu0 0.0
  %272 = vmatprep.subr.mxu0 0.0
  %273 = vmatpush1.msra.mxu0 0.0
  %274 = vmatprep.subr.mxu0 0.0
  %275 = vmatpush1.msra.mxu0 0.0
  %276 = vmatprep.subr.mxu0 0.0
  %277 = vmatpush1.msra.mxu0 0.0
  %278 = vmatprep.subr.mxu0 0.0
  %279 = vmatpush1.msra.mxu0 0.0
  %280 = vmatprep.subr.mxu0 0.0
  %281 = vmatpush1.msra.mxu0 0.0
  %282 = vmatprep.subr.mxu0 0.0
  %283 = vmatpush1.msra.mxu0 0.0
  %284 = vmatprep.mubr.f32.mxu0 0.0
  %285 = vmatmul.mubr.f32.gmra.mrb[0].mxu0 %v215
  %v286 = vpop.f32.mrb[0].mxu0
  %v287 = vadd.f32 %v213, %v286
  %v288 = vpop.f32.mrb[0].mxu0
  %289 = vmatprep.mubr.f32.mxu0 0.0
  %290 = vmatmul.mubr.f32.gmra.mrb[0].mxu0 %v218
  %v291 = vpop.f32.mrb[0].mxu0
  %v292 = vadd.f32 %v213, %v291
  %v293 = vpop.f32.mrb[0].mxu0
  %294 = vdwg.mxu0
  %v295 = vlaneseq
  %v296 = vshrl.u32 %v295, 7
  %v297 = vlaneseq
  %v298 = vand.u32 %v297, 127
  %vm299 = vcmp.lt.s32.totalorder %v296, 2
  %v300 = vmul.u32 %v296, 8
  %v301 = vsub.s32 %v296, 2
  %v302 = vmul.u32 %v301, 8
  %v303 = vadd.s32 %v302, 16
  %v304 = vsel %vm299, %v300, %v303
  %vm305 = vcmp.ge.s32.totalorder %v298, %v304
  %v306 = vadd.s32 %v304, 8
  %vm307 = vcmp.lt.s32.totalorder %v298, %v306
  %vm308 = vmand %vm305, %vm307
  %vm309 = vmand %vm308, %vm299
  %v310 = vsel %vm309, 0.125, 0.0
  %vm311 = vcmask 130048
  %v313 = vsel %vm311, %v310, 0
  %315 = vmatprep.subr.mxu0 0.0
  %316 = vmatpush1.msra.mxu0 %v287
  %317 = vmatprep.subr.mxu0 0.0
  %318 = vmatpush1.msra.mxu0 %v292
  %319 = vmatprep.subr.mxu0 0.0
  %320 = vmatpush1.msra.mxu0 0.0
  %321 = vmatprep.subr.mxu0 0.0
  %322 = vmatpush1.msra.mxu0 0.0
  %323 = vmatprep.subr.mxu0 0.0
  %324 = vmatpush1.msra.mxu0 0.0
  %325 = vmatprep.subr.mxu0 0.0
  %326 = vmatpush1.msra.mxu0 0.0
  %327 = vmatprep.subr.mxu0 0.0
  %328 = vmatpush1.msra.mxu0 0.0
  %329 = vmatprep.subr.mxu0 0.0
  %330 = vmatpush1.msra.mxu0 0.0
  %331 = vmatprep.subr.mxu0 0.0
  %332 = vmatpush1.msra.mxu0 0.0
  %333 = vmatprep.subr.mxu0 0.0
  %334 = vmatpush1.msra.mxu0 0.0
  %335 = vmatprep.subr.mxu0 0.0
  %336 = vmatpush1.msra.mxu0 0.0
  %337 = vmatprep.subr.mxu0 0.0
  %338 = vmatpush1.msra.mxu0 0.0
  %339 = vmatprep.subr.mxu0 0.0
  %340 = vmatpush1.msra.mxu0 0.0
  %341 = vmatprep.subr.mxu0 0.0
  %342 = vmatpush1.msra.mxu0 0.0
  %343 = vmatprep.subr.mxu0 0.0
  %344 = vmatpush1.msra.mxu0 0.0
  %345 = vmatprep.subr.mxu0 0.0
  %346 = vmatpush1.msra.mxu0 0.0
  %347 = vmatprep.subr.mxu0 0.0
  %348 = vmatpush1.msra.mxu0 0.0
  %349 = vmatprep.subr.mxu0 0.0
  %350 = vmatpush1.msra.mxu0 0.0
  %351 = vmatprep.subr.mxu0 0.0
  %352 = vmatpush1.msra.mxu0 0.0
  %353 = vmatprep.subr.mxu0 0.0
  %354 = vmatpush1.msra.mxu0 0.0
  %355 = vmatprep.subr.mxu0 0.0
  %356 = vmatpush1.msra.mxu0 0.0
  %357 = vmatprep.subr.mxu0 0.0
  %358 = vmatpush1.msra.mxu0 0.0
  %359 = vmatprep.subr.mxu0 0.0
  %360 = vmatpush1.msra.mxu0 0.0
  %361 = vmatprep.subr.mxu0 0.0
  %362 = vmatpush1.msra.mxu0 0.0
  %363 = vmatprep.subr.mxu0 0.0
  %364 = vmatpush1.msra.mxu0 0.0
  %365 = vmatprep.subr.mxu0 0.0
  %366 = vmatpush1.msra.mxu0 0.0
  %367 = vmatprep.subr.mxu0 0.0
  %368 = vmatpush1.msra.mxu0 0.0
  %369 = vmatprep.subr.mxu0 0.0
  %370 = vmatpush1.msra.mxu0 0.0
  %371 = vmatprep.subr.mxu0 0.0
  %372 = vmatpush1.msra.mxu0 0.0
  %373 = vmatprep.subr.mxu0 0.0
  %374 = vmatpush1.msra.mxu0 0.0
  %375 = vmatprep.subr.mxu0 0.0
  %376 = vmatpush1.msra.mxu0 0.0
  %377 = vmatprep.subr.mxu0 0.0
  %378 = vmatpush1.msra.mxu0 0.0
  %379 = vmatprep.mubr.f32.mxu0 0.0
  %380 = vmatmul.mubr.f32.gmra.mrb[0].mxu0 %v313
  %v381 = vpop.f32.mrb[0].mxu0
  %v382 = vadd.f32 0.0, %v381
  %v383 = vpop.f32.mrb[0].mxu0
  %384 = vdwg.mxu0
  %v385 = vld [vmem:[%s1 + $0x60] sm:$0xff]
  %v386 = vld [vmem:[%s1 + $0x68] sm:$0x1]
  %v387 = vlaneseq
  %v388 = vshrl.u32 %v387, 7
  %v389 = vsub.s32 0, %v388
  %v390 = vrot.slane %v386, %v389
  %vm391 = vcmask 64512
  %v393 = vsel %vm391, %v382, 0
  %395 = vmatprep.subr.mxu0 0.0
  %396 = vmatpush1.msra.mxu0 %v385
  %397 = vmatprep.subr.mxu0 0.0
  %398 = vmatpush1.msra.mxu0 0.0
  %399 = vmatprep.subr.mxu0 0.0
  %400 = vmatpush1.msra.mxu0 0.0
  %401 = vmatprep.subr.mxu0 0.0
  %402 = vmatpush1.msra.mxu0 0.0
  %403 = vmatprep.subr.mxu0 0.0
  %404 = vmatpush1.msra.mxu0 0.0
  %405 = vmatprep.subr.mxu0 0.0
  %406 = vmatpush1.msra.mxu0 0.0
  %407 = vmatprep.subr.mxu0 0.0
  %408 = vmatpush1.msra.mxu0 0.0
  %409 = vmatprep.subr.mxu0 0.0
  %410 = vmatpush1.msra.mxu0 0.0
  %411 = vmatprep.subr.mxu0 0.0
  %412 = vmatpush1.msra.mxu0 0.0
  %413 = vmatprep.subr.mxu0 0.0
  %414 = vmatpush1.msra.mxu0 0.0
  %415 = vmatprep.subr.mxu0 0.0
  %416 = vmatpush1.msra.mxu0 0.0
  %417 = vmatprep.subr.mxu0 0.0
  %418 = vmatpush1.msra.mxu0 0.0
  %419 = vmatprep.subr.mxu0 0.0
  %420 = vmatpush1.msra.mxu0 0.0
  %421 = vmatprep.subr.mxu0 0.0
  %422 = vmatpush1.msra.mxu0 0.0
  %423 = vmatprep.subr.mxu0 0.0
  %424 = vmatpush1.msra.mxu0 0.0
  %425 = vmatprep.subr.mxu0 0.0
  %426 = vmatpush1.msra.mxu0 0.0
  %427 = vmatprep.subr.mxu0 0.0
  %428 = vmatpush1.msra.mxu0 0.0
  %429 = vmatprep.subr.mxu0 0.0
  %430 = vmatpush1.msra.mxu0 0.0
  %431 = vmatprep.subr.mxu0 0.0
  %432 = vmatpush1.msra.mxu0 0.0
  %433 = vmatprep.subr.mxu0 0.0
  %434 = vmatpush1.msra.mxu0 0.0
  %435 = vmatprep.subr.mxu0 0.0
  %436 = vmatpush1.msra.mxu0 0.0
  %437 = vmatprep.subr.mxu0 0.0
  %438 = vmatpush1.msra.mxu0 0.0
  %439 = vmatprep.subr.mxu0 0.0
  %440 = vmatpush1.msra.mxu0 0.0
  %441 = vmatprep.subr.mxu0 0.0
  %442 = vmatpush1.msra.mxu0 0.0
  %443 = vmatprep.subr.mxu0 0.0
  %444 = vmatpush1.msra.mxu0 0.0
  %445 = vmatprep.subr.mxu0 0.0
  %446 = vmatpush1.msra.mxu0 0.0
  %447 = vmatprep.subr.mxu0 0.0
  %448 = vmatpush1.msra.mxu0 0.0
  %449 = vmatprep.subr.mxu0 0.0
  %450 = vmatpush1.msra.mxu0 0.0
  %451 = vmatprep.subr.mxu0 0.0
  %452 = vmatpush1.msra.mxu0 0.0
  %453 = vmatprep.subr.mxu0 0.0
  %454 = vmatpush1.msra.mxu0 0.0
  %455 = vmatprep.subr.mxu0 0.0
  %456 = vmatpush1.msra.mxu0 0.0
  %457 = vmatprep.subr.mxu0 0.0
  %458 = vmatpush1.msra.mxu0 0.0
  %459 = vmatprep.mubr.f32.mxu0 0.0
  %460 = vmatmul.mubr.f32.gmra.mrb[0].mxu0 %v393
  %v461 = vpop.f32.mrb[0].mxu0
  %v462 = vadd.f32 %v390, %v461
  %v463 = vpop.f32.mrb[0].mxu0
  %464 = vdwg.mxu0
  %v465 = vmax.f32 %v462, 0.0
  %v466 = vld [vmem:[%s1 + $0x70] sm:$0xff]
  %v467 = vld [vmem:[%s1 + $0x78] sm:$0x1]
  %v468 = vlaneseq
  %v469 = vshrl.u32 %v468, 7
  %v470 = vsub.s32 0, %v469
  %v471 = vrot.slane %v467, %v470
  %v473 = vsel %vm391, %v465, 0
  %475 = vmatprep.subr.mxu0 0.0
  %476 = vmatpush1.msra.mxu0 %v466
  %477 = vmatprep.subr.mxu0 0.0
  %478 = vmatpush1.msra.mxu0 0.0
  %479 = vmatprep.subr.mxu0 0.0
  %480 = vmatpush1.msra.mxu0 0.0
  %481 = vmatprep.subr.mxu0 0.0
  %482 = vmatpush1.msra.mxu0 0.0
  %483 = vmatprep.subr.mxu0 0.0
  %484 = vmatpush1.msra.mxu0 0.0
  %485 = vmatprep.subr.mxu0 0.0
  %486 = vmatpush1.msra.mxu0 0.0
  %487 = vmatprep.subr.mxu0 0.0
  %488 = vmatpush1.msra.mxu0 0.0
  %489 = vmatprep.subr.mxu0 0.0
  %490 = vmatpush1.msra.mxu0 0.0
  %491 = vmatprep.subr.mxu0 0.0
  %492 = vmatpush1.msra.mxu0 0.0
  %493 = vmatprep.subr.mxu0 0.0
  %494 = vmatpush1.msra.mxu0 0.0
  %495 = vmatprep.subr.mxu0 0.0
  %496 = vmatpush1.msra.mxu0 0.0
  %497 = vmatprep.subr.mxu0 0.0
  %498 = vmatpush1.msra.mxu0 0.0
  %499 = vmatprep.subr.mxu0 0.0
  %500 = vmatpush1.msra.mxu0 0.0
  %501 = vmatprep.subr.mxu0 0.0
  %502 = vmatpush1.msra.mxu0 0.0
  %503 = vmatprep.subr.mxu0 0.0
  %504 = vmatpush1.msra.mxu0 0.0
  %505 = vmatprep.subr.mxu0 0.0
  %506 = vmatpush1.msra.mxu0 0.0
  %507 = vmatprep.subr.mxu0 0.0
  %508 = vmatpush1.msra.mxu0 0.0
  %509 = vmatprep.subr.mxu0 0.0
  %510 = vmatpush1.msra.mxu0 0.0
  %511 = vmatprep.subr.mxu0 0.0
  %512 = vmatpush1.msra.mxu0 0.0
  %513 = vmatprep.subr.mxu0 0.0
  %514 = vmatpush1.msra.mxu0 0.0
  %515 = vmatprep.subr.mxu0 0.0
  %516 = vmatpush1.msra.mxu0 0.0
  %517 = vmatprep.subr.mxu0 0.0
  %518 = vmatpush1.msra.mxu0 0.0
  %519 = vmatprep.subr.mxu0 0.0
  %520 = vmatpush1.msra.mxu0 0.0
  %521 = vmatprep.subr.mxu0 0.0
  %522 = vmatpush1.msra.mxu0 0.0
  %523 = vmatprep.subr.mxu0 0.0
  %524 = vmatpush1.msra.mxu0 0.0
  %525 = vmatprep.subr.mxu0 0.0
  %526 = vmatpush1.msra.mxu0 0.0
  %527 = vmatprep.subr.mxu0 0.0
  %528 = vmatpush1.msra.mxu0 0.0
  %529 = vmatprep.subr.mxu0 0.0
  %530 = vmatpush1.msra.mxu0 0.0
  %531 = vmatprep.subr.mxu0 0.0
  %532 = vmatpush1.msra.mxu0 0.0
  %533 = vmatprep.subr.mxu0 0.0
  %534 = vmatpush1.msra.mxu0 0.0
  %535 = vmatprep.subr.mxu0 0.0
  %536 = vmatpush1.msra.mxu0 0.0
  %537 = vmatprep.subr.mxu0 0.0
  %538 = vmatpush1.msra.mxu0 0.0
  %539 = vmatprep.mubr.f32.mxu0 0.0
  %540 = vmatmul.mubr.f32.gmra.mrb[0].mxu0 %v473
  %v541 = vpop.f32.mrb[0].mxu0
  %v542 = vadd.f32 %v471, %v541
  %v543 = vpop.f32.mrb[0].mxu0
  %544 = vdwg.mxu0
  %vm545 = vcmp.lt.s32.totalorder %v298, 8
  %v546 = vxor.u32 %v542, 2147483648
  %v547 = vmul.f32 %v546, 1.442695
  %v548 = vpow.pop %v547
  %v549 = vadd.f32 %v548, 1.0
  %v550 = vrcp.pop %v549
  %v551 = vmul.f32 1.0, %v550
  %v552 = vmul.f32 %v551, 0.9
  %v553 = vadd.f32 %v552, 0.1
  %v554 = vsel %vm545, %v542, %v553
  %555 = vst.msk [vmem:[%s2] sm:$0xff] %vm311, %v554
  %v556 = vmul.f32 %v554, %v17
  %v557 = vld [vmem:[%s1 + $0x88] sm:$0xff]
  %v558 = vld [vmem:[%s1 + $0x90] sm:$0xff]
  %v559 = vld [vmem:[%s1 + $0x98] sm:$0x1]
  %v560 = vlaneseq
  %v561 = vshrl.u32 %v560, 7
  %v562 = vsub.s32 0, %v561
  %v563 = vrot.slane %v559, %v562
  %v565 = vsel %vm311, %v556, 0
  %567 = vmatprep.subr.mxu0 0.0
  %568 = vmatpush1.msra.mxu0 %v557
  %569 = vmatprep.subr.mxu0 0.0
  %570 = vmatpush1.msra.mxu0 %v558
  %571 = vmatprep.subr.mxu0 0.0
  %572 = vmatpush1.msra.mxu0 0.0
  %573 = vmatprep.subr.mxu0 0.0
  %574 = vmatpush1.msra.mxu0 0.0
  %575 = vmatprep.subr.mxu0 0.0
  %576 = vmatpush1.msra.mxu0 0.0
  %577 = vmatprep.subr.mxu0 0.0
  %578 = vmatpush1.msra.mxu0 0.0
  %579 = vmatprep.subr.mxu0 0.0
  %580 = vmatpush1.msra.mxu0 0.0
  %581 = vmatprep.subr.mxu0 0.0
  %582 = vmatpush1.msra.mxu0 0.0
  %583 = vmatprep.subr.mxu0 0.0
  %584 = vmatpush1.msra.mxu0 0.0
  %585 = vmatprep.subr.mxu0 0.0
  %586 = vmatpush1.msra.mxu0 0.0
  %587 = vmatprep.subr.mxu0 0.0
  %588 = vmatpush1.msra.mxu0 0.0
  %589 = vmatprep.subr.mxu0 0.0
  %590 = vmatpush1.msra.mxu0 0.0
  %591 = vmatprep.subr.mxu0 0.0
  %592 = vmatpush1.msra.mxu0 0.0
  %593 = vmatprep.subr.mxu0 0.0
  %594 = vmatpush1.msra.mxu0 0.0
  %595 = vmatprep.subr.mxu0 0.0
  %596 = vmatpush1.msra.mxu0 0.0
  %597 = vmatprep.subr.mxu0 0.0
  %598 = vmatpush1.msra.mxu0 0.0
  %599 = vmatprep.subr.mxu0 0.0
  %600 = vmatpush1.msra.mxu0 0.0
  %601 = vmatprep.subr.mxu0 0.0
  %602 = vmatpush1.msra.mxu0 0.0
  %603 = vmatprep.subr.mxu0 0.0
  %604 = vmatpush1.msra.mxu0 0.0
  %605 = vmatprep.subr.mxu0 0.0
  %606 = vmatpush1.msra.mxu0 0.0
  %607 = vmatprep.subr.mxu0 0.0
  %608 = vmatpush1.msra.mxu0 0.0
  %609 = vmatprep.subr.mxu0 0.0
  %610 = vmatpush1.msra.mxu0 0.0
  %611 = vmatprep.subr.mxu0 0.0
  %612 = vmatpush1.msra.mxu0 0.0
  %613 = vmatprep.subr.mxu0 0.0
  %614 = vmatpush1.msra.mxu0 0.0
  %615 = vmatprep.subr.mxu0 0.0
  %616 = vmatpush1.msra.mxu0 0.0
  %617 = vmatprep.subr.mxu0 0.0
  %618 = vmatpush1.msra.mxu0 0.0
  %619 = vmatprep.subr.mxu0 0.0
  %620 = vmatpush1.msra.mxu0 0.0
  %621 = vmatprep.subr.mxu0 0.0
  %622 = vmatpush1.msra.mxu0 0.0
  %623 = vmatprep.subr.mxu0 0.0
  %624 = vmatpush1.msra.mxu0 0.0
  %625 = vmatprep.subr.mxu0 0.0
  %626 = vmatpush1.msra.mxu0 0.0
  %627 = vmatprep.subr.mxu0 0.0
  %628 = vmatpush1.msra.mxu0 0.0
  %629 = vmatprep.subr.mxu0 0.0
  %630 = vmatpush1.msra.mxu0 0.0
  %631 = vmatprep.mubr.f32.mxu0 0.0
  %632 = vmatmul.mubr.f32.gmra.mrb[0].mxu0 %v565
  %v633 = vpop.f32.mrb[0].mxu0
  %v634 = vadd.f32 %v563, %v633
  %v635 = vpop.f32.mrb[0].mxu0
  %636 = vdwg.mxu0
  %v637 = vadd.s32 %v296, 8
  %v638 = vadd.s32 %v296, 16
  %v639 = vadd.s32 %v296, 24
  %vm640 = vcmp.lt.s32.totalorder %v298, 2
  %v641 = vmul.u32 %v298, 16
  %vm642 = vcmp.ge.s32.totalorder %v296, %v641
  %vm643 = vcmp.ge.s32.totalorder %v637, %v641
  %vm644 = vcmp.ge.s32.totalorder %v638, %v641
  %vm645 = vcmp.ge.s32.totalorder %v639, %v641
  %vm646 = vmand %vm640, %vm642
  %vm647 = vmand %vm640, %vm643
  %vm648 = vmand %vm640, %vm644
  %vm649 = vmand %vm640, %vm645
  %v650 = vadd.s32 %v298, 1
  %v651 = vmul.u32 %v650, 16
  %vm652 = vcmp.lt.s32.totalorder %v296, %v651
  %vm653 = vcmp.lt.s32.totalorder %v637, %v651
  %vm654 = vcmp.lt.s32.totalorder %v638, %v651
  %vm655 = vcmp.lt.s32.totalorder %v639, %v651
  %vm656 = vmand %vm646, %vm652
  %vm657 = vmand %vm647, %vm653
  %vm658 = vmand %vm648, %vm654
  %vm659 = vmand %vm649, %vm655
  %v660 = vsel %vm656, 1.0, 0.0
  %v661 = vsel %vm657, 1.0, 0.0
  %v662 = vsel %vm658, 1.0, 0.0
  %v663 = vsel %vm659, 1.0, 0.0
  %v664 = vld [vmem:[%s1 + $0x80] sm:$0x3]
  %v666 = vsel %vm391, %v660, 0
  %v669 = vsel %vm391, %v661, 0
  %v672 = vsel %vm391, %v662, 0
  %v675 = vsel %vm391, %v663, 0
  %677 = vmatprep.subr.mxu0 0.0
  %678 = vmatpush1.msra.mxu0 %v634
  %679 = vmatprep.subr.mxu0 0.0
  %680 = vmatpush1.msra.mxu0 0.0
  %681 = vmatprep.subr.mxu0 0.0
  %682 = vmatpush1.msra.mxu0 0.0
  %683 = vmatprep.subr.mxu0 0.0
  %684 = vmatpush1.msra.mxu0 0.0
  %685 = vmatprep.subr.mxu0 0.0
  %686 = vmatpush1.msra.mxu0 0.0
  %687 = vmatprep.subr.mxu0 0.0
  %688 = vmatpush1.msra.mxu0 0.0
  %689 = vmatprep.subr.mxu0 0.0
  %690 = vmatpush1.msra.mxu0 0.0
  %691 = vmatprep.subr.mxu0 0.0
  %692 = vmatpush1.msra.mxu0 0.0
  %693 = vmatprep.subr.mxu0 0.0
  %694 = vmatpush1.msra.mxu0 0.0
  %695 = vmatprep.subr.mxu0 0.0
  %696 = vmatpush1.msra.mxu0 0.0
  %697 = vmatprep.subr.mxu0 0.0
  %698 = vmatpush1.msra.mxu0 0.0
  %699 = vmatprep.subr.mxu0 0.0
  %700 = vmatpush1.msra.mxu0 0.0
  %701 = vmatprep.subr.mxu0 0.0
  %702 = vmatpush1.msra.mxu0 0.0
  %703 = vmatprep.subr.mxu0 0.0
  %704 = vmatpush1.msra.mxu0 0.0
  %705 = vmatprep.subr.mxu0 0.0
  %706 = vmatpush1.msra.mxu0 0.0
  %707 = vmatprep.subr.mxu0 0.0
  %708 = vmatpush1.msra.mxu0 0.0
  %709 = vmatprep.subr.mxu0 0.0
  %710 = vmatpush1.msra.mxu0 0.0
  %711 = vmatprep.subr.mxu0 0.0
  %712 = vmatpush1.msra.mxu0 0.0
  %713 = vmatprep.subr.mxu0 0.0
  %714 = vmatpush1.msra.mxu0 0.0
  %715 = vmatprep.subr.mxu0 0.0
  %716 = vmatpush1.msra.mxu0 0.0
  %717 = vmatprep.subr.mxu0 0.0
  %718 = vmatpush1.msra.mxu0 0.0
  %719 = vmatprep.subr.mxu0 0.0
  %720 = vmatpush1.msra.mxu0 0.0
  %721 = vmatprep.subr.mxu0 0.0
  %722 = vmatpush1.msra.mxu0 0.0
  %723 = vmatprep.subr.mxu0 0.0
  %724 = vmatpush1.msra.mxu0 0.0
  %725 = vmatprep.subr.mxu0 0.0
  %726 = vmatpush1.msra.mxu0 0.0
  %727 = vmatprep.subr.mxu0 0.0
  %728 = vmatpush1.msra.mxu0 0.0
  %729 = vmatprep.subr.mxu0 0.0
  %730 = vmatpush1.msra.mxu0 0.0
  %731 = vmatprep.subr.mxu0 0.0
  %732 = vmatpush1.msra.mxu0 0.0
  %733 = vmatprep.subr.mxu0 0.0
  %734 = vmatpush1.msra.mxu0 0.0
  %735 = vmatprep.subr.mxu0 0.0
  %736 = vmatpush1.msra.mxu0 0.0
  %737 = vmatprep.subr.mxu0 0.0
  %738 = vmatpush1.msra.mxu0 0.0
  %739 = vmatprep.subr.mxu0 0.0
  %740 = vmatpush1.msra.mxu0 0.0
  %741 = vmatprep.mubr.f32.mxu0 0.0
  %742 = vmatmul.mubr.f32.gmra.mrb[0].mxu0 %v666
  %v743 = vpop.f32.mrb[0].mxu0
  %v744 = vadd.f32 0.0, %v743
  %v745 = vpop.f32.mrb[0].mxu0
  %746 = vmatprep.mubr.f32.mxu0 0.0
  %747 = vmatmul.mubr.f32.gmra.mrb[0].mxu0 %v669
  %v748 = vpop.f32.mrb[0].mxu0
  %v749 = vadd.f32 0.0, %v748
  %v750 = vpop.f32.mrb[0].mxu0
  %751 = vmatprep.mubr.f32.mxu0 0.0
  %752 = vmatmul.mubr.f32.gmra.mrb[0].mxu0 %v672
  %v753 = vpop.f32.mrb[0].mxu0
  %v754 = vadd.f32 0.0, %v753
  %v755 = vpop.f32.mrb[0].mxu0
  %756 = vmatprep.mubr.f32.mxu0 0.0
  %757 = vmatmul.mubr.f32.gmra.mrb[0].mxu0 %v675
  %v758 = vpop.f32.mrb[0].mxu0
  %v759 = vadd.f32 0.0, %v758
  %v760 = vpop.f32.mrb[0].mxu0
  %761 = vdwg.mxu0
  %vm762 = vcmask 15360
  %v764 = vsel %vm762, %v13, 0
  %v767 = vsel %vm762, %v14, 0
  %v770 = vsel %vm762, %v15, 0
  %v773 = vsel %vm762, %v16, 0
  %vm775 = vcmask 1041408
  %v777 = vsel %vm775, %v664, 0
  %779 = vmatprep.subr.mxu0 0.0
  %780 = vmatpush1.msra.mxu0 %v777
  %781 = vmatprep.subr.mxu0 0.0
  %782 = vmatpush1.msra.mxu0 0.0
  %783 = vmatprep.subr.mxu0 0.0
  %784 = vmatpush1.msra.mxu0 0.0
  %785 = vmatprep.subr.mxu0 0.0
  %786 = vmatpush1.msra.mxu0 0.0
  %787 = vmatprep.subr.mxu0 0.0
  %788 = vmatpush1.msra.mxu0 0.0
  %789 = vmatprep.subr.mxu0 0.0
  %790 = vmatpush1.msra.mxu0 0.0
  %791 = vmatprep.subr.mxu0 0.0
  %792 = vmatpush1.msra.mxu0 0.0
  %793 = vmatprep.subr.mxu0 0.0
  %794 = vmatpush1.msra.mxu0 0.0
  %795 = vmatprep.subr.mxu0 0.0
  %796 = vmatpush1.msra.mxu0 0.0
  %797 = vmatprep.subr.mxu0 0.0
  %798 = vmatpush1.msra.mxu0 0.0
  %799 = vmatprep.subr.mxu0 0.0
  %800 = vmatpush1.msra.mxu0 0.0
  %801 = vmatprep.subr.mxu0 0.0
  %802 = vmatpush1.msra.mxu0 0.0
  %803 = vmatprep.subr.mxu0 0.0
  %804 = vmatpush1.msra.mxu0 0.0
  %805 = vmatprep.subr.mxu0 0.0
  %806 = vmatpush1.msra.mxu0 0.0
  %807 = vmatprep.subr.mxu0 0.0
  %808 = vmatpush1.msra.mxu0 0.0
  %809 = vmatprep.subr.mxu0 0.0
  %810 = vmatpush1.msra.mxu0 0.0
  %811 = vmatprep.subr.mxu0 0.0
  %812 = vmatpush1.msra.mxu0 0.0
  %813 = vmatprep.subr.mxu0 0.0
  %814 = vmatpush1.msra.mxu0 0.0
  %815 = vmatprep.subr.mxu0 0.0
  %816 = vmatpush1.msra.mxu0 0.0
  %817 = vmatprep.subr.mxu0 0.0
  %818 = vmatpush1.msra.mxu0 0.0
  %819 = vmatprep.subr.mxu0 0.0
  %820 = vmatpush1.msra.mxu0 0.0
  %821 = vmatprep.subr.mxu0 0.0
  %822 = vmatpush1.msra.mxu0 0.0
  %823 = vmatprep.subr.mxu0 0.0
  %824 = vmatpush1.msra.mxu0 0.0
  %825 = vmatprep.subr.mxu0 0.0
  %826 = vmatpush1.msra.mxu0 0.0
  %827 = vmatprep.subr.mxu0 0.0
  %828 = vmatpush1.msra.mxu0 0.0
  %829 = vmatprep.subr.mxu0 0.0
  %830 = vmatpush1.msra.mxu0 0.0
  %831 = vmatprep.subr.mxu0 0.0
  %832 = vmatpush1.msra.mxu0 0.0
  %833 = vmatprep.subr.mxu0 0.0
  %834 = vmatpush1.msra.mxu0 0.0
  %835 = vmatprep.subr.mxu0 0.0
  %836 = vmatpush1.msra.mxu0 0.0
  %837 = vmatprep.subr.mxu0 0.0
  %838 = vmatpush1.msra.mxu0 0.0
  %839 = vmatprep.subr.mxu0 0.0
  %840 = vmatpush1.msra.mxu0 0.0
  %841 = vmatprep.subr.mxu0 0.0
  %842 = vmatpush1.msra.mxu0 0.0
  %843 = vmatprep.mubr.f32.mxu0 0.0
  %844 = vmatmul.mubr.f32.gmra.mrb[0].mxu0 %v764
  %v845 = vpop.f32.mrb[0].mxu0
  %v846 = vadd.f32 %v744, %v845
  %v847 = vpop.f32.mrb[0].mxu0
  %848 = vmatprep.mubr.f32.mxu0 0.0
  %849 = vmatmul.mubr.f32.gmra.mrb[0].mxu0 %v767
  %v850 = vpop.f32.mrb[0].mxu0
  %v851 = vadd.f32 %v749, %v850
  %v852 = vpop.f32.mrb[0].mxu0
  %853 = vmatprep.mubr.f32.mxu0 0.0
  %854 = vmatmul.mubr.f32.gmra.mrb[0].mxu0 %v770
  %v855 = vpop.f32.mrb[0].mxu0
  %v856 = vadd.f32 %v754, %v855
  %v857 = vpop.f32.mrb[0].mxu0
  %858 = vmatprep.mubr.f32.mxu0 0.0
  %859 = vmatmul.mubr.f32.gmra.mrb[0].mxu0 %v773
  %v860 = vpop.f32.mrb[0].mxu0
  %v861 = vadd.f32 %v759, %v860
  %v862 = vpop.f32.mrb[0].mxu0
  %863 = vdwg.mxu0
  %v864 = vmax.f32 %v846, 0.0
  %v865 = vmax.f32 %v851, 0.0
  %v866 = vmax.f32 %v856, 0.0
  %v867 = vmax.f32 %v861, 0.0
  %v868 = vld [vmem:[%s1 + $0xa0] sm:$0xff]
  %v869 = vld [vmem:[%s1 + $0xa8] sm:$0xff]
  %v870 = vld [vmem:[%s1 + $0xb0] sm:$0xff]
  %v871 = vld [vmem:[%s1 + $0xb8] sm:$0xff]
  %v872 = vld [vmem:[%s1 + $0xc0] sm:$0x1]
  %v873 = vlaneseq
  %v874 = vshrl.u32 %v873, 7
  %v875 = vsub.s32 0, %v874
  %v876 = vrot.slane %v872, %v875
  %v878 = vsel %vm121, %v864, 0
  %v881 = vsel %vm121, %v865, 0
  %v884 = vsel %vm121, %v866, 0
  %v887 = vsel %vm121, %v867, 0
  %889 = vmatprep.subr.mxu0 0.0
  %890 = vmatpush1.msra.mxu0 %v868
  %891 = vmatprep.subr.mxu0 0.0
  %892 = vmatpush1.msra.mxu0 %v869
  %893 = vmatprep.subr.mxu0 0.0
  %894 = vmatpush1.msra.mxu0 %v870
  %895 = vmatprep.subr.mxu0 0.0
  %896 = vmatpush1.msra.mxu0 %v871
  %897 = vmatprep.subr.mxu0 0.0
  %898 = vmatpush1.msra.mxu0 0.0
  %899 = vmatprep.subr.mxu0 0.0
  %900 = vmatpush1.msra.mxu0 0.0
  %901 = vmatprep.subr.mxu0 0.0
  %902 = vmatpush1.msra.mxu0 0.0
  %903 = vmatprep.subr.mxu0 0.0
  %904 = vmatpush1.msra.mxu0 0.0
  %905 = vmatprep.subr.mxu0 0.0
  %906 = vmatpush1.msra.mxu0 0.0
  %907 = vmatprep.subr.mxu0 0.0
  %908 = vmatpush1.msra.mxu0 0.0
  %909 = vmatprep.subr.mxu0 0.0
  %910 = vmatpush1.msra.mxu0 0.0
  %911 = vmatprep.subr.mxu0 0.0
  %912 = vmatpush1.msra.mxu0 0.0
  %913 = vmatprep.subr.mxu0 0.0
  %914 = vmatpush1.msra.mxu0 0.0
  %915 = vmatprep.subr.mxu0 0.0
  %916 = vmatpush1.msra.mxu0 0.0
  %917 = vmatprep.subr.mxu0 0.0
  %918 = vmatpush1.msra.mxu0 0.0
  %919 = vmatprep.subr.mxu0 0.0
  %920 = vmatpush1.msra.mxu0 0.0
  %921 = vmatprep.subr.mxu0 0.0
  %922 = vmatpush1.msra.mxu0 0.0
  %923 = vmatprep.subr.mxu0 0.0
  %924 = vmatpush1.msra.mxu0 0.0
  %925 = vmatprep.subr.mxu0 0.0
  %926 = vmatpush1.msra.mxu0 0.0
  %927 = vmatprep.subr.mxu0 0.0
  %928 = vmatpush1.msra.mxu0 0.0
  %929 = vmatprep.subr.mxu0 0.0
  %930 = vmatpush1.msra.mxu0 0.0
  %931 = vmatprep.subr.mxu0 0.0
  %932 = vmatpush1.msra.mxu0 0.0
  %933 = vmatprep.subr.mxu0 0.0
  %934 = vmatpush1.msra.mxu0 0.0
  %935 = vmatprep.subr.mxu0 0.0
  %936 = vmatpush1.msra.mxu0 0.0
  %937 = vmatprep.subr.mxu0 0.0
  %938 = vmatpush1.msra.mxu0 0.0
  %939 = vmatprep.subr.mxu0 0.0
  %940 = vmatpush1.msra.mxu0 0.0
  %941 = vmatprep.subr.mxu0 0.0
  %942 = vmatpush1.msra.mxu0 0.0
  %943 = vmatprep.subr.mxu0 0.0
  %944 = vmatpush1.msra.mxu0 0.0
  %945 = vmatprep.subr.mxu0 0.0
  %946 = vmatpush1.msra.mxu0 0.0
  %947 = vmatprep.subr.mxu0 0.0
  %948 = vmatpush1.msra.mxu0 0.0
  %949 = vmatprep.subr.mxu0 0.0
  %950 = vmatpush1.msra.mxu0 0.0
  %951 = vmatprep.subr.mxu0 0.0
  %952 = vmatpush1.msra.mxu0 0.0
  %953 = vmatprep.mubr.f32.mxu0 0.0
  %954 = vmatmul.mubr.f32.gmra.mrb[0].mxu0 %v878
  %v955 = vpop.f32.mrb[0].mxu0
  %v956 = vadd.f32 %v876, %v955
  %v957 = vpop.f32.mrb[0].mxu0
  %958 = vmatprep.mubr.f32.mxu0 0.0
  %959 = vmatmul.mubr.f32.gmra.mrb[0].mxu0 %v881
  %v960 = vpop.f32.mrb[0].mxu0
  %v961 = vadd.f32 %v876, %v960
  %v962 = vpop.f32.mrb[0].mxu0
  %963 = vmatprep.mubr.f32.mxu0 0.0
  %964 = vmatmul.mubr.f32.gmra.mrb[0].mxu0 %v884
  %v965 = vpop.f32.mrb[0].mxu0
  %v966 = vadd.f32 %v876, %v965
  %v967 = vpop.f32.mrb[0].mxu0
  %968 = vmatprep.mubr.f32.mxu0 0.0
  %969 = vmatmul.mubr.f32.gmra.mrb[0].mxu0 %v887
  %v970 = vpop.f32.mrb[0].mxu0
  %v971 = vadd.f32 %v876, %v970
  %v972 = vpop.f32.mrb[0].mxu0
  %973 = vdwg.mxu0
  %v974 = vmax.f32 %v956, 0.0
  %v975 = vmax.f32 %v961, 0.0
  %v976 = vmax.f32 %v966, 0.0
  %v977 = vmax.f32 %v971, 0.0
  %v978 = vld [vmem:[%s1 + $0xc8] sm:$0xff]
  %v979 = vld [vmem:[%s1 + $0xd0] sm:$0xff]
  %v980 = vld [vmem:[%s1 + $0xd8] sm:$0xff]
  %v981 = vld [vmem:[%s1 + $0xe0] sm:$0xff]
  %v982 = vld [vmem:[%s1 + $0xe8] sm:$0x1]
  %v983 = vlaneseq
  %v984 = vshrl.u32 %v983, 7
  %v985 = vsub.s32 0, %v984
  %v986 = vrot.slane %v982, %v985
  %v988 = vsel %vm121, %v974, 0
  %v991 = vsel %vm121, %v975, 0
  %v994 = vsel %vm121, %v976, 0
  %v997 = vsel %vm121, %v977, 0
  %999 = vmatprep.subr.mxu0 0.0
  %1000 = vmatpush1.msra.mxu0 %v978
  %1001 = vmatprep.subr.mxu0 0.0
  %1002 = vmatpush1.msra.mxu0 %v979
  %1003 = vmatprep.subr.mxu0 0.0
  %1004 = vmatpush1.msra.mxu0 %v980
  %1005 = vmatprep.subr.mxu0 0.0
  %1006 = vmatpush1.msra.mxu0 %v981
  %1007 = vmatprep.subr.mxu0 0.0
  %1008 = vmatpush1.msra.mxu0 0.0
  %1009 = vmatprep.subr.mxu0 0.0
  %1010 = vmatpush1.msra.mxu0 0.0
  %1011 = vmatprep.subr.mxu0 0.0
  %1012 = vmatpush1.msra.mxu0 0.0
  %1013 = vmatprep.subr.mxu0 0.0
  %1014 = vmatpush1.msra.mxu0 0.0
  %1015 = vmatprep.subr.mxu0 0.0
  %1016 = vmatpush1.msra.mxu0 0.0
  %1017 = vmatprep.subr.mxu0 0.0
  %1018 = vmatpush1.msra.mxu0 0.0
  %1019 = vmatprep.subr.mxu0 0.0
  %1020 = vmatpush1.msra.mxu0 0.0
  %1021 = vmatprep.subr.mxu0 0.0
  %1022 = vmatpush1.msra.mxu0 0.0
  %1023 = vmatprep.subr.mxu0 0.0
  %1024 = vmatpush1.msra.mxu0 0.0
  %1025 = vmatprep.subr.mxu0 0.0
  %1026 = vmatpush1.msra.mxu0 0.0
  %1027 = vmatprep.subr.mxu0 0.0
  %1028 = vmatpush1.msra.mxu0 0.0
  %1029 = vmatprep.subr.mxu0 0.0
  %1030 = vmatpush1.msra.mxu0 0.0
  %1031 = vmatprep.subr.mxu0 0.0
  %1032 = vmatpush1.msra.mxu0 0.0
  %1033 = vmatprep.subr.mxu0 0.0
  %1034 = vmatpush1.msra.mxu0 0.0
  %1035 = vmatprep.subr.mxu0 0.0
  %1036 = vmatpush1.msra.mxu0 0.0
  %1037 = vmatprep.subr.mxu0 0.0
  %1038 = vmatpush1.msra.mxu0 0.0
  %1039 = vmatprep.subr.mxu0 0.0
  %1040 = vmatpush1.msra.mxu0 0.0
  %1041 = vmatprep.subr.mxu0 0.0
  %1042 = vmatpush1.msra.mxu0 0.0
  %1043 = vmatprep.subr.mxu0 0.0
  %1044 = vmatpush1.msra.mxu0 0.0
  %1045 = vmatprep.subr.mxu0 0.0
  %1046 = vmatpush1.msra.mxu0 0.0
  %1047 = vmatprep.subr.mxu0 0.0
  %1048 = vmatpush1.msra.mxu0 0.0
  %1049 = vmatprep.subr.mxu0 0.0
  %1050 = vmatpush1.msra.mxu0 0.0
  %1051 = vmatprep.subr.mxu0 0.0
  %1052 = vmatpush1.msra.mxu0 0.0
  %1053 = vmatprep.subr.mxu0 0.0
  %1054 = vmatpush1.msra.mxu0 0.0
  %1055 = vmatprep.subr.mxu0 0.0
  %1056 = vmatpush1.msra.mxu0 0.0
  %1057 = vmatprep.subr.mxu0 0.0
  %1058 = vmatpush1.msra.mxu0 0.0
  %1059 = vmatprep.subr.mxu0 0.0
  %1060 = vmatpush1.msra.mxu0 0.0
  %1061 = vmatprep.subr.mxu0 0.0
  %1062 = vmatpush1.msra.mxu0 0.0
  %1063 = vmatprep.mubr.f32.mxu0 0.0
  %1064 = vmatmul.mubr.f32.gmra.mrb[0].mxu0 %v988
  %v1065 = vpop.f32.mrb[0].mxu0
  %v1066 = vadd.f32 %v986, %v1065
  %v1067 = vpop.f32.mrb[0].mxu0
  %1068 = vmatprep.mubr.f32.mxu0 0.0
  %1069 = vmatmul.mubr.f32.gmra.mrb[0].mxu0 %v991
  %v1070 = vpop.f32.mrb[0].mxu0
  %v1071 = vadd.f32 %v986, %v1070
  %v1072 = vpop.f32.mrb[0].mxu0
  %1073 = vmatprep.mubr.f32.mxu0 0.0
  %1074 = vmatmul.mubr.f32.gmra.mrb[0].mxu0 %v994
  %v1075 = vpop.f32.mrb[0].mxu0
  %v1076 = vadd.f32 %v986, %v1075
  %v1077 = vpop.f32.mrb[0].mxu0
  %1078 = vmatprep.mubr.f32.mxu0 0.0
  %1079 = vmatmul.mubr.f32.gmra.mrb[0].mxu0 %v997
  %v1080 = vpop.f32.mrb[0].mxu0
  %v1081 = vadd.f32 %v986, %v1080
  %v1082 = vpop.f32.mrb[0].mxu0
  %1083 = vdwg.mxu0
  %v1084 = vmax.f32 %v1066, 0.0
  %v1085 = vmax.f32 %v1071, 0.0
  %v1086 = vmax.f32 %v1076, 0.0
  %v1087 = vmax.f32 %v1081, 0.0
  %v1088 = vld [vmem:[%s1 + $0xf0] sm:$0xff]
  %v1089 = vld [vmem:[%s1 + $0xf8] sm:$0xff]
  %v1090 = vld [vmem:[%s1 + $0x100] sm:$0xff]
  %v1091 = vld [vmem:[%s1 + $0x108] sm:$0xff]
  %v1092 = vld [vmem:[%s1 + $0x110] sm:$0x1]
  %v1093 = vlaneseq
  %v1094 = vshrl.u32 %v1093, 7
  %v1095 = vsub.s32 0, %v1094
  %v1096 = vrot.slane %v1092, %v1095
  %v1098 = vsel %vm121, %v1084, 0
  %v1101 = vsel %vm121, %v1085, 0
  %v1104 = vsel %vm121, %v1086, 0
  %v1107 = vsel %vm121, %v1087, 0
  %1109 = vmatprep.subr.mxu0 0.0
  %1110 = vmatpush1.msra.mxu0 %v1088
  %1111 = vmatprep.subr.mxu0 0.0
  %1112 = vmatpush1.msra.mxu0 %v1089
  %1113 = vmatprep.subr.mxu0 0.0
  %1114 = vmatpush1.msra.mxu0 %v1090
  %1115 = vmatprep.subr.mxu0 0.0
  %1116 = vmatpush1.msra.mxu0 %v1091
  %1117 = vmatprep.subr.mxu0 0.0
  %1118 = vmatpush1.msra.mxu0 0.0
  %1119 = vmatprep.subr.mxu0 0.0
  %1120 = vmatpush1.msra.mxu0 0.0
  %1121 = vmatprep.subr.mxu0 0.0
  %1122 = vmatpush1.msra.mxu0 0.0
  %1123 = vmatprep.subr.mxu0 0.0
  %1124 = vmatpush1.msra.mxu0 0.0
  %1125 = vmatprep.subr.mxu0 0.0
  %1126 = vmatpush1.msra.mxu0 0.0
  %1127 = vmatprep.subr.mxu0 0.0
  %1128 = vmatpush1.msra.mxu0 0.0
  %1129 = vmatprep.subr.mxu0 0.0
  %1130 = vmatpush1.msra.mxu0 0.0
  %1131 = vmatprep.subr.mxu0 0.0
  %1132 = vmatpush1.msra.mxu0 0.0
  %1133 = vmatprep.subr.mxu0 0.0
  %1134 = vmatpush1.msra.mxu0 0.0
  %1135 = vmatprep.subr.mxu0 0.0
  %1136 = vmatpush1.msra.mxu0 0.0
  %1137 = vmatprep.subr.mxu0 0.0
  %1138 = vmatpush1.msra.mxu0 0.0
  %1139 = vmatprep.subr.mxu0 0.0
  %1140 = vmatpush1.msra.mxu0 0.0
  %1141 = vmatprep.subr.mxu0 0.0
  %1142 = vmatpush1.msra.mxu0 0.0
  %1143 = vmatprep.subr.mxu0 0.0
  %1144 = vmatpush1.msra.mxu0 0.0
  %1145 = vmatprep.subr.mxu0 0.0
  %1146 = vmatpush1.msra.mxu0 0.0
  %1147 = vmatprep.subr.mxu0 0.0
  %1148 = vmatpush1.msra.mxu0 0.0
  %1149 = vmatprep.subr.mxu0 0.0
  %1150 = vmatpush1.msra.mxu0 0.0
  %1151 = vmatprep.subr.mxu0 0.0
  %1152 = vmatpush1.msra.mxu0 0.0
  %1153 = vmatprep.subr.mxu0 0.0
  %1154 = vmatpush1.msra.mxu0 0.0
  %1155 = vmatprep.subr.mxu0 0.0
  %1156 = vmatpush1.msra.mxu0 0.0
  %1157 = vmatprep.subr.mxu0 0.0
  %1158 = vmatpush1.msra.mxu0 0.0
  %1159 = vmatprep.subr.mxu0 0.0
  %1160 = vmatpush1.msra.mxu0 0.0
  %1161 = vmatprep.subr.mxu0 0.0
  %1162 = vmatpush1.msra.mxu0 0.0
  %1163 = vmatprep.subr.mxu0 0.0
  %1164 = vmatpush1.msra.mxu0 0.0
  %1165 = vmatprep.subr.mxu0 0.0
  %1166 = vmatpush1.msra.mxu0 0.0
  %1167 = vmatprep.subr.mxu0 0.0
  %1168 = vmatpush1.msra.mxu0 0.0
  %1169 = vmatprep.subr.mxu0 0.0
  %1170 = vmatpush1.msra.mxu0 0.0
  %1171 = vmatprep.subr.mxu0 0.0
  %1172 = vmatpush1.msra.mxu0 0.0
  %1173 = vmatprep.mubr.f32.mxu0 0.0
  %1174 = vmatmul.mubr.f32.gmra.mrb[0].mxu0 %v1098
  %v1175 = vpop.f32.mrb[0].mxu0
  %v1176 = vadd.f32 %v1096, %v1175
  %v1177 = vpop.f32.mrb[0].mxu0
  %1178 = vmatprep.mubr.f32.mxu0 0.0
  %1179 = vmatmul.mubr.f32.gmra.mrb[0].mxu0 %v1101
  %v1180 = vpop.f32.mrb[0].mxu0
  %v1181 = vadd.f32 %v1096, %v1180
  %v1182 = vpop.f32.mrb[0].mxu0
  %1183 = vmatprep.mubr.f32.mxu0 0.0
  %1184 = vmatmul.mubr.f32.gmra.mrb[0].mxu0 %v1104
  %v1185 = vpop.f32.mrb[0].mxu0
  %v1186 = vadd.f32 %v1096, %v1185
  %v1187 = vpop.f32.mrb[0].mxu0
  %1188 = vmatprep.mubr.f32.mxu0 0.0
  %1189 = vmatmul.mubr.f32.gmra.mrb[0].mxu0 %v1107
  %v1190 = vpop.f32.mrb[0].mxu0
  %v1191 = vadd.f32 %v1096, %v1190
  %v1192 = vpop.f32.mrb[0].mxu0
  %1193 = vdwg.mxu0
  %vm1194 = vcmp.lt.s32.totalorder %v298, 1
  %vm1195 = vcmp.gt.f32.partialorder %v1176, 20.0
  %vm1196 = vcmp.gt.f32.partialorder %v1181, 20.0
  %vm1197 = vcmp.gt.f32.partialorder %v1186, 20.0
  %vm1198 = vcmp.gt.f32.partialorder %v1191, 20.0
  %v1199 = vsel %vm1195, 0.0, %v1176
  %v1200 = vsel %vm1196, 0.0, %v1181
  %v1201 = vsel %vm1197, 0.0, %v1186
  %v1202 = vsel %vm1198, 0.0, %v1191
  %v1203 = vmul.f32 %v1199, 1.442695
  %v1204 = vpow.pop %v1203
  %v1205 = vmul.f32 %v1200, 1.442695
  %v1206 = vpow.pop %v1205
  %v1207 = vmul.f32 %v1201, 1.442695
  %v1208 = vpow.pop %v1207
  %v1209 = vmul.f32 %v1202, 1.442695
  %v1210 = vpow.pop %v1209
  %v1211 = vadd.f32 %v1204, 1.0
  %v1212 = vlog2.pop %v1211
  %v1213 = vmul.f32 %v1212, 0.6931472
  %v1214 = vmul.f32 -0.5, %v1204
  %v1215 = vadd.f32 %v1214, 1.0
  %v1216 = vmul.f32 %v1215, %v1204
  %v1217 = vand.u32 2147483647, %v1204
  %vm1218 = vcmp.lt.f32.partialorder %v1217, 0.0004427343
  %v1219 = vsel %vm1218, %v1216, %v1213
  %v1220 = vadd.f32 %v1206, 1.0
  %v1221 = vlog2.pop %v1220
  %v1222 = vmul.f32 %v1221, 0.6931472
  %v1223 = vmul.f32 -0.5, %v1206
  %v1224 = vadd.f32 %v1223, 1.0
  %v1225 = vmul.f32 %v1224, %v1206
  %v1226 = vand.u32 2147483647, %v1206
  %vm1227 = vcmp.lt.f32.partialorder %v1226, 0.0004427343
  %v1228 = vsel %vm1227, %v1225, %v1222
  %v1229 = vadd.f32 %v1208, 1.0
  %v1230 = vlog2.pop %v1229
  %v1231 = vmul.f32 %v1230, 0.6931472
  %v1232 = vmul.f32 -0.5, %v1208
  %v1233 = vadd.f32 %v1232, 1.0
  %v1234 = vmul.f32 %v1233, %v1208
  %v1235 = vand.u32 2147483647, %v1208
  %vm1236 = vcmp.lt.f32.partialorder %v1235, 0.0004427343
  %v1237 = vsel %vm1236, %v1234, %v1231
  %v1238 = vadd.f32 %v1210, 1.0
  %v1239 = vlog2.pop %v1238
  %v1240 = vmul.f32 %v1239, 0.6931472
  %v1241 = vmul.f32 -0.5, %v1210
  %v1242 = vadd.f32 %v1241, 1.0
  %v1243 = vmul.f32 %v1242, %v1210
  %v1244 = vand.u32 2147483647, %v1210
  %vm1245 = vcmp.lt.f32.partialorder %v1244, 0.0004427343
  %v1246 = vsel %vm1245, %v1243, %v1240
  %v1247 = vsel %vm1195, %v1176, %v1219
  %v1248 = vsel %vm1196, %v1181, %v1228
  %v1249 = vsel %vm1197, %v1186, %v1237
  %v1250 = vsel %vm1198, %v1191, %v1246
  %v1251 = vmul.f32 %v1247, 0.9
  %v1252 = vmul.f32 %v1248, 0.9
  %v1253 = vmul.f32 %v1249, 0.9
  %v1254 = vmul.f32 %v1250, 0.9
  %v1255 = vadd.f32 %v1251, 0.1
  %v1256 = vadd.f32 %v1252, 0.1
  %v1257 = vadd.f32 %v1253, 0.1
  %v1258 = vadd.f32 %v1254, 0.1
  %v1259 = vsel %vm1194, %v1176, %v1255
  %v1260 = vsel %vm1194, %v1181, %v1256
  %v1261 = vsel %vm1194, %v1186, %v1257
  %v1262 = vsel %vm1194, %v1191, %v1258
  %1263 = vst.msk [vmem:[%s2 + $0x8] sm:$0xff] %vm311, %v1259
  %1264 = vst.msk [vmem:[%s2 + $0x10] sm:$0xff] %vm311, %v1260
  %1265 = vst.msk [vmem:[%s2 + $0x18] sm:$0xff] %vm311, %v1261
  %1266 = vst.msk [vmem:[%s2 + $0x20] sm:$0xff] %vm311, %v1262
  // Predicated region
  $region10: #{neural_process_forward.1} parent=0 // pred_check
    _
  $region11: #{neural_process_forward.1} parent=0 // pred_check_branch
    %1268 = sbr.rel (0) target = $region13
  $region12: #{neural_process_forward.1} parent=0 // pred_region
    _
  $region13: #{neural_process_forward.1} parent=0 // pred_fallthru
    _
  // Predicated region
  $region14: #{neural_process_forward.1} parent=0 // pred_check
    _
  $region15: #{neural_process_forward.1} parent=0 // pred_check_branch
    %1270 = sbr.rel (0) target = $region17
  $region16: #{neural_process_forward.1} parent=0 // pred_region
    _
  $region17: #{neural_process_forward.1} parent=0 // pred_fallthru
    _

</llo_original>
